<compile_context>
chip_gen: v6e
topology: v6e:2x2x1
jax: 0.10.0
libtpu: 0.0.40
codegen_flags: <defaults>
</compile_context>

<pallas_src>
import functools

import numpy as np

import jax
import jax.numpy as jnp
from jax.experimental import pallas as pl
from jax.experimental.pallas import tpu as pltpu


# ----------------------- in-kernel building blocks --------------------------
# These run inside the fused kernel on VMEM-resident values.

def _conv3x3_relu(groups, w, b, width):
    """3x3 SAME conv (+ fused channel-group concat) + bias + ReLU.

    groups: list of (Cg, M) bf16 values at the same resolution (M = H*W).
    w:      (Cout, sum_g 9*Cg) bf16, columns ordered [group][tap dy,dx][chan].
    b:      (Cout, 1) f32.
    Returns (Cout, M) f32 (post-ReLU).
    """
    m = groups[0].shape[1]
    pad = width + 1  # covers the largest flat tap shift |(dy-1)*W + (dx-1)|

    # Column-validity masks (only the x-wrap needs masking; the flat zero pad
    # already handles out-of-range rows).  Built from a lane iota -> no mask DMA.
    col = jax.lax.broadcasted_iota(jnp.int32, (1, m), 1) % width
    mask_l = jnp.where(col > 0, 1.0, 0.0).astype(jnp.bfloat16)          # dx == 0
    mask_r = jnp.where(col < width - 1, 1.0, 0.0).astype(jnp.bfloat16)  # dx == 2

    staged = []
    for g in groups:
        cg = g.shape[0]
        zpad = jnp.zeros((cg, pad), g.dtype)
        gp = jnp.concatenate([zpad, g, zpad], axis=1)                   # (Cg, M+2*pad)
        for dy in range(3):
            for dx in range(3):
                s = (dy - 1) * width + (dx - 1)
                win = gp[:, pad + s:pad + s + m]                        # shifted window
                if dx == 0:
                    win = win * mask_l        # bf16 mask on Cg rows, pre-dot
                elif dx == 2:
                    win = win * mask_r        # (center column taps: no mask work)
                staged.append(win)
    xs = jnp.concatenate(staged, axis=0)                                # (K, M) bf16
    acc = jnp.dot(w, xs, preferred_element_type=jnp.float32)            # one MXU GEMM
    return jnp.maximum(acc + b, 0.0)


def _maxpool2x2(x, width, sel):
    """2x2 maxpool on a flat (C, H*W) bf16 tile.

    Two shifted maxes build the per-position 2x2 max; a 0/1 selection matmul
    (sel: (M, M/4) bf16) compacts to the strided anchors (exact picks).
    """
    c, m = x.shape

    def shifted(v, s):
        return jnp.concatenate([v[:, s:], jnp.zeros((c, s), v.dtype)], axis=1)

    h = jnp.maximum(x, shifted(x, 1))          # max over the two columns
    v = jnp.maximum(h, shifted(h, width))      # max over the two rows
    out = jnp.dot(v, sel, preferred_element_type=jnp.float32)
    return out.astype(x.dtype)


def _upsample2x(x, up):
    """2x nearest upsample via a 0/1 expansion matmul (up: (m, 4m) bf16)."""
    return jnp.dot(x, up, preferred_element_type=jnp.float32).astype(x.dtype)


def _make_unet_kernel(n_enc, n_dec, width):
    """Whole-network kernel; one grid step == one image, everything in VMEM."""

    def kernel(*refs):
        it = iter(refs)
        x_ref = next(it)
        enc_wb = [(next(it), next(it)) for _ in range(n_enc)]
        dec_wb = [(next(it), next(it)) for _ in range(n_dec)]
        pool_sel = [next(it) for _ in range(n_enc)]
        up_mats = [next(it) for _ in range(n_dec)]
        out_ref = next(it)

        cur_w = width
        x = x_ref[0].astype(jnp.bfloat16)                 # (C0, H*W)

        # ------------------------------ encoder ------------------------------
        skips = []
        for i in range(n_enc):
            wr, br = enc_wb[i]
            y = _conv3x3_relu([x], wr[...], br[...], cur_w)               # f32
            x = _maxpool2x2(y.astype(jnp.bfloat16), cur_w, pool_sel[i][...])
            cur_w //= 2
            skips.append(x)

        # ------------------------------ decoder ------------------------------
        y = None
        for i in range(n_dec):
            wr, br = dec_wb[i]
            up = up_mats[i][...]
            skip_up = _upsample2x(skips[-(i + 1)], up)    # in-kernel upsample
            x_up = _upsample2x(x, up)
            cur_w *= 2
            # concat(skip, x) is just extra staged rows inside the conv GEMM.
            y = _conv3x3_relu([skip_up, x_up], wr[...], br[...], cur_w)
            x = y.astype(jnp.bfloat16)

        out_ref[0] = y                                    # f32 store (lane-dense)

    return kernel


# ------------------------ host-side constants / packing ---------------------

@functools.lru_cache(maxsize=None)
def _pool_select_matrix(h, w):
    """(H*W, H*W/4) 0/1 matrix selecting the top-left anchor of each 2x2 block."""
    m_in = h * w
    w_out = w // 2
    m_out = (h // 2) * w_out
    sel = np.zeros((m_in, m_out), np.float32)
    for j in range(m_out):
        yo, xo = divmod(j, w_out)
        sel[(2 * yo) * w + (2 * xo), j] = 1.0
    return jnp.asarray(sel, jnp.bfloat16)


@functools.lru_cache(maxsize=None)
def _upsample_matrix(h, w):
    """(h*w, 4*h*w) 0/1 nearest-neighbor expansion matrix (h,w) -> (2h,2w)."""
    m_lo = h * w
    w_hi = 2 * w
    m_hi = 4 * m_lo
    up = np.zeros((m_lo, m_hi), np.float32)
    for mh in range(m_hi):
        yh, xh = divmod(mh, w_hi)
        up[(yh // 2) * w + (xh // 2), mh] = 1.0
    return jnp.asarray(up, jnp.bfloat16)


def _pack_w(w):
    # (3,3,Cin,Cout) f32 -> (Cout, 9*Cin) bf16; column = (dy*3+dx)*Cin + c,
    # matching the kernel's staged-row ordering.
    kh, kw, cin, cout = w.shape
    return jnp.transpose(w, (3, 0, 1, 2)).reshape(cout, kh * kw * cin).astype(jnp.bfloat16)


# ------------------------------ params / forward -----------------------------

def init_unet_params(key, encoder_channels, decoder_out_channels):
    """encoder_channels e.g. [4, 8, 16]; decoder_out_channels e.g. [16, 8]."""
    params = {"enc": [], "dec": []}
    for i in range(len(encoder_channels) - 1):
        cin, cout = encoder_channels[i], encoder_channels[i + 1]
        key, k = jax.random.split(key)
        w = jax.random.normal(k, (3, 3, cin, cout), jnp.float32) * (2.0 / (9 * cin)) ** 0.5
        params["enc"].append((w, jnp.zeros((cout,), jnp.float32)))

    enc_out = encoder_channels[1:]
    x_ch = enc_out[-1]
    for i, cout in enumerate(decoder_out_channels):
        skip_ch = enc_out[-(i + 1)]
        cin = skip_ch + x_ch                          # channel concat of skip + current
        key, k = jax.random.split(key)
        w = jax.random.normal(k, (3, 3, cin, cout), jnp.float32) * (2.0 / (9 * cin)) ** 0.5
        params["dec"].append((w, jnp.zeros((cout,), jnp.float32)))
        x_ch = cout
    return params


def unet_forward(params, x_nchw):
    n, c0, hgt, wid = x_nchw.shape
    m0 = hgt * wid
    n_enc, n_dec = len(params["enc"]), len(params["dec"])
    enc_out = [w.shape[3] for (w, _) in params["enc"]]
    c_out = params["dec"][-1][0].shape[3]

    args = [x_nchw.reshape(n, c0, m0)]                               # per-image block
    in_specs = [pl.BlockSpec((1, c0, m0), lambda i: (i, 0, 0))]

    def add_resident(a):
        # Full-array block, constant index_map -> resident in VMEM across the grid.
        args.append(a)
        in_specs.append(pl.BlockSpec(a.shape, lambda i: (0,) * a.ndim))

    for (w, b) in params["enc"]:
        add_resident(_pack_w(w))
        add_resident(b.reshape(-1, 1).astype(jnp.float32))
    for i, (w, b) in enumerate(params["dec"]):
        skip_ch = enc_out[-(i + 1)]
        # Split Cin into (skip, x) groups so conv(concat) == one GEMM on stacked rows.
        add_resident(jnp.concatenate([_pack_w(w[:, :, :skip_ch, :]),
                                      _pack_w(w[:, :, skip_ch:, :])], axis=1))
        add_resident(b.reshape(-1, 1).astype(jnp.float32))
    for i in range(n_enc):
        add_resident(_pool_select_matrix(hgt >> i, wid >> i))
    for i in range(n_dec):
        add_resident(_upsample_matrix(hgt >> (n_enc - i), wid >> (n_enc - i)))

    out = pl.pallas_call(
        _make_unet_kernel(n_enc, n_dec, wid),
        out_shape=jax.ShapeDtypeStruct((n, c_out, m0), jnp.float32),
        grid=(n,),
        in_specs=in_specs,
        out_specs=pl.BlockSpec((1, c_out, m0), lambda i: (i, 0, 0)),
        compiler_params=pltpu.CompilerParams(dimension_semantics=("parallel",)),
    )(*args)
    return out.reshape(n, c_out, hgt, wid)


def unet_reference(params, x):
    """Pure-JAX f32 reference with identical semantics (for self-check)."""
    def conv(t, w, b):
        y = jax.lax.conv_general_dilated(t, w, (1, 1), "SAME",
                                         dimension_numbers=("NCHW", "HWIO", "NCHW"))
        return jax.nn.relu(y + b.reshape(1, -1, 1, 1))

    def pool(t):
        n_, c_, h_, w_ = t.shape
        return t.reshape(n_, c_, h_ // 2, 2, w_ // 2, 2).max(axis=(3, 5))

    def up(t):
        return jnp.repeat(jnp.repeat(t, 2, axis=2), 2, axis=3)

    skips = []
    for (w, b) in params["enc"]:
        x = pool(conv(x, w, b))
        skips.append(x)
    for i, (w, b) in enumerate(params["dec"]):
        skip = skips[-(i + 1)]
        x = conv(jnp.concatenate([up(skip), up(x)], axis=1), w, b)
    return x


# ----------------------------------- main ------------------------------------

if __name__ == "__main__":
    key = jax.random.PRNGKey(0)
    k_param, k_x = jax.random.split(key)

    # image_size=16, ascend_layers=3, descend_layers=3
    encoder_channels = [4, 8, 16]
    decoder_out_channels = [16, 8]

    params = init_unet_params(k_param, encoder_channels, decoder_out_channels)
    x = jax.random.normal(k_x, (2, 4, 16, 16), jnp.float32)          # NCHW input

    fwd = jax.jit(unet_forward)
    y = fwd(params, x)
    jax.block_until_ready(y)

    assert y.shape == (2, 8, 16, 16), y.shape
    assert bool(jnp.all(jnp.isfinite(y)))

    # Loose self-check against the f32 reference (kernel uses bf16 activations).
    y_ref = unet_reference(params, x)
    rel_err = float(jnp.max(jnp.abs(y - y_ref)) /
                    jnp.maximum(jnp.max(jnp.abs(y_ref)), 1.0))
    assert rel_err < 0.1, rel_err

    print("KERNEL_OK")
</pallas_src>

<mosaic_0001>
module attributes {stable_mosaic.version = 11 : i64} {
  func.func @kernel(%arg0: i32, %arg1: memref<1x4x256xf32, #tpu.memory_space<vmem>>, %arg2: memref<8x36xbf16, #tpu.memory_space<vmem>>, %arg3: memref<8x1xf32, #tpu.memory_space<vmem>>, %arg4: memref<16x72xbf16, #tpu.memory_space<vmem>>, %arg5: memref<16x1xf32, #tpu.memory_space<vmem>>, %arg6: memref<16x288xbf16, #tpu.memory_space<vmem>>, %arg7: memref<16x1xf32, #tpu.memory_space<vmem>>, %arg8: memref<8x216xbf16, #tpu.memory_space<vmem>>, %arg9: memref<8x1xf32, #tpu.memory_space<vmem>>, %arg10: memref<256x64xbf16, #tpu.memory_space<vmem>>, %arg11: memref<64x16xbf16, #tpu.memory_space<vmem>>, %arg12: memref<16x64xbf16, #tpu.memory_space<vmem>>, %arg13: memref<64x256xbf16, #tpu.memory_space<vmem>>, %arg14: memref<1x8x256xf32, #tpu.memory_space<vmem>>) attributes {dimension_semantics = [#tpu.dimension_semantics<parallel>], iteration_bounds = array<i64: 2>, scalar_prefetch = 0 : i64, scratch_operands = 0 : i64, tpu.core_type = #tpu.core_type<tc>, window_params = [{transform_indices = @transform_0, window_bounds = array<i64: 1, 4, 256>}, {pipeline_mode = #tpu.pipeline_mode<synchronous>, transform_indices = @transform_1, window_bounds = array<i64: 8, 36>}, {pipeline_mode = #tpu.pipeline_mode<synchronous>, transform_indices = @transform_2, window_bounds = array<i64: 8, 1>}, {pipeline_mode = #tpu.pipeline_mode<synchronous>, transform_indices = @transform_3, window_bounds = array<i64: 16, 72>}, {pipeline_mode = #tpu.pipeline_mode<synchronous>, transform_indices = @transform_4, window_bounds = array<i64: 16, 1>}, {pipeline_mode = #tpu.pipeline_mode<synchronous>, transform_indices = @transform_5, window_bounds = array<i64: 16, 288>}, {pipeline_mode = #tpu.pipeline_mode<synchronous>, transform_indices = @transform_6, window_bounds = array<i64: 16, 1>}, {pipeline_mode = #tpu.pipeline_mode<synchronous>, transform_indices = @transform_7, window_bounds = array<i64: 8, 216>}, {pipeline_mode = #tpu.pipeline_mode<synchronous>, transform_indices = @transform_8, window_bounds = array<i64: 8, 1>}, {pipeline_mode = #tpu.pipeline_mode<synchronous>, transform_indices = @transform_9, window_bounds = array<i64: 256, 64>}, {pipeline_mode = #tpu.pipeline_mode<synchronous>, transform_indices = @transform_10, window_bounds = array<i64: 64, 16>}, {pipeline_mode = #tpu.pipeline_mode<synchronous>, transform_indices = @transform_11, window_bounds = array<i64: 16, 64>}, {pipeline_mode = #tpu.pipeline_mode<synchronous>, transform_indices = @transform_12, window_bounds = array<i64: 64, 256>}, {transform_indices = @transform_13, window_bounds = array<i64: 1, 8, 256>}]} {
    %c0 = arith.constant 0 : index
    %c0_0 = arith.constant 0 : index
    %c0_1 = arith.constant 0 : index
    %0 = vector.load %arg1[%c0, %c0_0, %c0_1] : memref<1x4x256xf32, #tpu.memory_space<vmem>>, vector<1x4x256xf32>
    %1 = vector.shape_cast %0 : vector<1x4x256xf32> to vector<4x256xf32>
    %2 = arith.truncf %1 : vector<4x256xf32> to vector<4x256xbf16>
    %c0_2 = arith.constant 0 : index
    %c0_3 = arith.constant 0 : index
    %3 = vector.load %arg2[%c0_2, %c0_3] : memref<8x36xbf16, #tpu.memory_space<vmem>>, vector<8x36xbf16>
    %c0_4 = arith.constant 0 : index
    %c0_5 = arith.constant 0 : index
    %4 = vector.load %arg3[%c0_4, %c0_5] : memref<8x1xf32, #tpu.memory_space<vmem>>, vector<8x1xf32>
    %5 = tpu.iota {dimensions = array<i32: 1>} : vector<1x256xi32>
    %c16_i32 = arith.constant 16 : i32
    %c0_i32 = arith.constant 0 : i32
    %6 = arith.cmpi eq, %c16_i32, %c0_i32 : i32
    %c1_i32 = arith.constant 1 : i32
    %7 = arith.select %6, %c1_i32, %c16_i32 : i32
    %8 = vector.broadcast %7 : i32 to vector<1x256xi32>
    %9 = arith.remsi %5, %8 : vector<1x256xi32>
    %c0_i32_6 = arith.constant 0 : i32
    %10 = vector.broadcast %c0_i32_6 : i32 to vector<1x256xi32>
    %11 = arith.cmpi ne, %9, %10 : vector<1x256xi32>
    %c0_i32_7 = arith.constant 0 : i32
    %12 = vector.broadcast %c0_i32_7 : i32 to vector<1x256xi32>
    %13 = arith.cmpi slt, %9, %12 : vector<1x256xi32>
    %c0_i32_8 = arith.constant 0 : i32
    %14 = arith.cmpi slt, %7, %c0_i32_8 : i32
    %15 = vector.broadcast %14 : i1 to vector<1x256xi1>
    %16 = vector.broadcast %15 : vector<1x256xi1> to vector<1x256xi1>
    %17 = arith.xori %13, %16 : vector<1x256xi1>
    %18 = arith.andi %17, %11 : vector<1x256xi1>
    %19 = vector.broadcast %7 : i32 to vector<1x256xi32>
    %20 = arith.addi %9, %19 : vector<1x256xi32>
    %21 = arith.select %18, %20, %9 : vector<1x256xi1>, vector<1x256xi32>
    %c0_i32_9 = arith.constant 0 : i32
    %22 = vector.broadcast %c0_i32_9 : i32 to vector<1x256xi32>
    %23 = arith.cmpi sgt, %21, %22 : vector<1x256xi32>
    %cst = arith.constant 1.000000e+00 : f32
    %cst_10 = arith.constant 0.000000e+00 : f32
    %24 = vector.broadcast %cst : f32 to vector<1x256xf32>
    %25 = vector.broadcast %cst_10 : f32 to vector<1x256xf32>
    %26 = arith.select %23, %24, %25 : vector<1x256xi1>, vector<1x256xf32>
    %27 = arith.truncf %26 : vector<1x256xf32> to vector<1x256xbf16>
    %c15_i32 = arith.constant 15 : i32
    %28 = vector.broadcast %c15_i32 : i32 to vector<1x256xi32>
    %29 = arith.cmpi slt, %21, %28 : vector<1x256xi32>
    %cst_11 = arith.constant 1.000000e+00 : f32
    %cst_12 = arith.constant 0.000000e+00 : f32
    %30 = vector.broadcast %cst_11 : f32 to vector<1x256xf32>
    %31 = vector.broadcast %cst_12 : f32 to vector<1x256xf32>
    %32 = arith.select %29, %30, %31 : vector<1x256xi1>, vector<1x256xf32>
    %33 = arith.truncf %32 : vector<1x256xf32> to vector<1x256xbf16>
    %cst_13 = arith.constant 0.000000e+00 : bf16
    %34 = vector.broadcast %cst_13 : bf16 to vector<4x17xbf16>
    %35 = tpu.concatenate %34, %2, %34 in 1 : vector<4x17xbf16>, vector<4x256xbf16>, vector<4x17xbf16> -> vector<4x290xbf16>
    %36 = vector.extract_strided_slice %35 {offsets = [0, 0], sizes = [4, 256], strides = [1, 1]} : vector<4x290xbf16> to vector<4x256xbf16>
    %37 = vector.broadcast %27 : vector<1x256xbf16> to vector<4x256xbf16>
    %38 = arith.mulf %36, %37 : vector<4x256xbf16>
    %39 = vector.extract_strided_slice %35 {offsets = [0, 1], sizes = [4, 256], strides = [1, 1]} : vector<4x290xbf16> to vector<4x256xbf16>
    %40 = vector.extract_strided_slice %35 {offsets = [0, 2], sizes = [4, 256], strides = [1, 1]} : vector<4x290xbf16> to vector<4x256xbf16>
    %41 = vector.broadcast %33 : vector<1x256xbf16> to vector<4x256xbf16>
    %42 = arith.mulf %40, %41 : vector<4x256xbf16>
    %43 = vector.extract_strided_slice %35 {offsets = [0, 16], sizes = [4, 256], strides = [1, 1]} : vector<4x290xbf16> to vector<4x256xbf16>
    %44 = vector.broadcast %27 : vector<1x256xbf16> to vector<4x256xbf16>
    %45 = arith.mulf %43, %44 : vector<4x256xbf16>
    %46 = vector.extract_strided_slice %35 {offsets = [0, 17], sizes = [4, 256], strides = [1, 1]} : vector<4x290xbf16> to vector<4x256xbf16>
    %47 = vector.extract_strided_slice %35 {offsets = [0, 18], sizes = [4, 256], strides = [1, 1]} : vector<4x290xbf16> to vector<4x256xbf16>
    %48 = vector.broadcast %33 : vector<1x256xbf16> to vector<4x256xbf16>
    %49 = arith.mulf %47, %48 : vector<4x256xbf16>
    %50 = vector.extract_strided_slice %35 {offsets = [0, 32], sizes = [4, 256], strides = [1, 1]} : vector<4x290xbf16> to vector<4x256xbf16>
    %51 = vector.broadcast %27 : vector<1x256xbf16> to vector<4x256xbf16>
    %52 = arith.mulf %50, %51 : vector<4x256xbf16>
    %53 = vector.extract_strided_slice %35 {offsets = [0, 33], sizes = [4, 256], strides = [1, 1]} : vector<4x290xbf16> to vector<4x256xbf16>
    %54 = vector.extract_strided_slice %35 {offsets = [0, 34], sizes = [4, 256], strides = [1, 1]} : vector<4x290xbf16> to vector<4x256xbf16>
    %55 = vector.broadcast %33 : vector<1x256xbf16> to vector<4x256xbf16>
    %56 = arith.mulf %54, %55 : vector<4x256xbf16>
    %57 = tpu.concatenate %38, %39, %42, %45, %46, %49, %52, %53, %56 in 0 : vector<4x256xbf16>, vector<4x256xbf16>, vector<4x256xbf16>, vector<4x256xbf16>, vector<4x256xbf16>, vector<4x256xbf16>, vector<4x256xbf16>, vector<4x256xbf16>, vector<4x256xbf16> -> vector<36x256xbf16>
    %cst_14 = arith.constant dense<0.000000e+00> : vector<8x256xf32>
    %58 = tpu.matmul %3, %57, %cst_14 {dimension_numbers = #tpu.dot_dimension_numbers<[1], [0], [0], [1], [0, 0, 1, 1], [], []>} : vector<8x36xbf16>, vector<36x256xbf16>, vector<8x256xf32> -> vector<8x256xf32>
    %59 = vector.broadcast %4 : vector<8x1xf32> to vector<8x256xf32>
    %60 = arith.addf %58, %59 : vector<8x256xf32>
    %cst_15 = arith.constant 0.000000e+00 : f32
    %61 = vector.broadcast %cst_15 : f32 to vector<8x256xf32>
    %62 = arith.maximumf %60, %61 : vector<8x256xf32>
    %63 = arith.truncf %62 : vector<8x256xf32> to vector<8x256xbf16>
    %c0_16 = arith.constant 0 : index
    %c0_17 = arith.constant 0 : index
    %64 = vector.load %arg10[%c0_16, %c0_17] : memref<256x64xbf16, #tpu.memory_space<vmem>>, vector<256x64xbf16>
    %65 = vector.extract_strided_slice %63 {offsets = [0, 1], sizes = [8, 255], strides = [1, 1]} : vector<8x256xbf16> to vector<8x255xbf16>
    %cst_18 = arith.constant 0.000000e+00 : bf16
    %66 = vector.broadcast %cst_18 : bf16 to vector<8x1xbf16>
    %67 = tpu.concatenate %65, %66 in 1 : vector<8x255xbf16>, vector<8x1xbf16> -> vector<8x256xbf16>
    %68 = arith.maximumf %63, %67 : vector<8x256xbf16>
    %69 = vector.extract_strided_slice %68 {offsets = [0, 16], sizes = [8, 240], strides = [1, 1]} : vector<8x256xbf16> to vector<8x240xbf16>
    %cst_19 = arith.constant 0.000000e+00 : bf16
    %70 = vector.broadcast %cst_19 : bf16 to vector<8x16xbf16>
    %71 = tpu.concatenate %69, %70 in 1 : vector<8x240xbf16>, vector<8x16xbf16> -> vector<8x256xbf16>
    %72 = arith.maximumf %68, %71 : vector<8x256xbf16>
    %cst_20 = arith.constant dense<0.000000e+00> : vector<8x64xf32>
    %73 = tpu.matmul %72, %64, %cst_20 {dimension_numbers = #tpu.dot_dimension_numbers<[1], [0], [0], [1], [0, 0, 1, 1], [], []>} : vector<8x256xbf16>, vector<256x64xbf16>, vector<8x64xf32> -> vector<8x64xf32>
    %74 = arith.truncf %73 : vector<8x64xf32> to vector<8x64xbf16>
    %c0_21 = arith.constant 0 : index
    %c0_22 = arith.constant 0 : index
    %75 = vector.load %arg4[%c0_21, %c0_22] : memref<16x72xbf16, #tpu.memory_space<vmem>>, vector<16x72xbf16>
    %c0_23 = arith.constant 0 : index
    %c0_24 = arith.constant 0 : index
    %76 = vector.load %arg5[%c0_23, %c0_24] : memref<16x1xf32, #tpu.memory_space<vmem>>, vector<16x1xf32>
    %77 = tpu.iota {dimensions = array<i32: 1>} : vector<1x64xi32>
    %c8_i32 = arith.constant 8 : i32
    %c0_i32_25 = arith.constant 0 : i32
    %78 = arith.cmpi eq, %c8_i32, %c0_i32_25 : i32
    %c1_i32_26 = arith.constant 1 : i32
    %79 = arith.select %78, %c1_i32_26, %c8_i32 : i32
    %80 = vector.broadcast %79 : i32 to vector<1x64xi32>
    %81 = arith.remsi %77, %80 : vector<1x64xi32>
    %c0_i32_27 = arith.constant 0 : i32
    %82 = vector.broadcast %c0_i32_27 : i32 to vector<1x64xi32>
    %83 = arith.cmpi ne, %81, %82 : vector<1x64xi32>
    %c0_i32_28 = arith.constant 0 : i32
    %84 = vector.broadcast %c0_i32_28 : i32 to vector<1x64xi32>
    %85 = arith.cmpi slt, %81, %84 : vector<1x64xi32>
    %c0_i32_29 = arith.constant 0 : i32
    %86 = arith.cmpi slt, %79, %c0_i32_29 : i32
    %87 = vector.broadcast %86 : i1 to vector<1x64xi1>
    %88 = vector.broadcast %87 : vector<1x64xi1> to vector<1x64xi1>
    %89 = arith.xori %85, %88 : vector<1x64xi1>
    %90 = arith.andi %89, %83 : vector<1x64xi1>
    %91 = vector.broadcast %79 : i32 to vector<1x64xi32>
    %92 = arith.addi %81, %91 : vector<1x64xi32>
    %93 = arith.select %90, %92, %81 : vector<1x64xi1>, vector<1x64xi32>
    %c0_i32_30 = arith.constant 0 : i32
    %94 = vector.broadcast %c0_i32_30 : i32 to vector<1x64xi32>
    %95 = arith.cmpi sgt, %93, %94 : vector<1x64xi32>
    %cst_31 = arith.constant 1.000000e+00 : f32
    %cst_32 = arith.constant 0.000000e+00 : f32
    %96 = vector.broadcast %cst_31 : f32 to vector<1x64xf32>
    %97 = vector.broadcast %cst_32 : f32 to vector<1x64xf32>
    %98 = arith.select %95, %96, %97 : vector<1x64xi1>, vector<1x64xf32>
    %99 = arith.truncf %98 : vector<1x64xf32> to vector<1x64xbf16>
    %c7_i32 = arith.constant 7 : i32
    %100 = vector.broadcast %c7_i32 : i32 to vector<1x64xi32>
    %101 = arith.cmpi slt, %93, %100 : vector<1x64xi32>
    %cst_33 = arith.constant 1.000000e+00 : f32
    %cst_34 = arith.constant 0.000000e+00 : f32
    %102 = vector.broadcast %cst_33 : f32 to vector<1x64xf32>
    %103 = vector.broadcast %cst_34 : f32 to vector<1x64xf32>
    %104 = arith.select %101, %102, %103 : vector<1x64xi1>, vector<1x64xf32>
    %105 = arith.truncf %104 : vector<1x64xf32> to vector<1x64xbf16>
    %cst_35 = arith.constant 0.000000e+00 : bf16
    %106 = vector.broadcast %cst_35 : bf16 to vector<8x9xbf16>
    %107 = tpu.concatenate %106, %74, %106 in 1 : vector<8x9xbf16>, vector<8x64xbf16>, vector<8x9xbf16> -> vector<8x82xbf16>
    %108 = vector.extract_strided_slice %107 {offsets = [0, 0], sizes = [8, 64], strides = [1, 1]} : vector<8x82xbf16> to vector<8x64xbf16>
    %109 = vector.broadcast %99 : vector<1x64xbf16> to vector<8x64xbf16>
    %110 = arith.mulf %108, %109 : vector<8x64xbf16>
    %111 = vector.extract_strided_slice %107 {offsets = [0, 1], sizes = [8, 64], strides = [1, 1]} : vector<8x82xbf16> to vector<8x64xbf16>
    %112 = vector.extract_strided_slice %107 {offsets = [0, 2], sizes = [8, 64], strides = [1, 1]} : vector<8x82xbf16> to vector<8x64xbf16>
    %113 = vector.broadcast %105 : vector<1x64xbf16> to vector<8x64xbf16>
    %114 = arith.mulf %112, %113 : vector<8x64xbf16>
    %115 = vector.extract_strided_slice %107 {offsets = [0, 8], sizes = [8, 64], strides = [1, 1]} : vector<8x82xbf16> to vector<8x64xbf16>
    %116 = vector.broadcast %99 : vector<1x64xbf16> to vector<8x64xbf16>
    %117 = arith.mulf %115, %116 : vector<8x64xbf16>
    %118 = vector.extract_strided_slice %107 {offsets = [0, 9], sizes = [8, 64], strides = [1, 1]} : vector<8x82xbf16> to vector<8x64xbf16>
    %119 = vector.extract_strided_slice %107 {offsets = [0, 10], sizes = [8, 64], strides = [1, 1]} : vector<8x82xbf16> to vector<8x64xbf16>
    %120 = vector.broadcast %105 : vector<1x64xbf16> to vector<8x64xbf16>
    %121 = arith.mulf %119, %120 : vector<8x64xbf16>
    %122 = vector.extract_strided_slice %107 {offsets = [0, 16], sizes = [8, 64], strides = [1, 1]} : vector<8x82xbf16> to vector<8x64xbf16>
    %123 = vector.broadcast %99 : vector<1x64xbf16> to vector<8x64xbf16>
    %124 = arith.mulf %122, %123 : vector<8x64xbf16>
    %125 = vector.extract_strided_slice %107 {offsets = [0, 17], sizes = [8, 64], strides = [1, 1]} : vector<8x82xbf16> to vector<8x64xbf16>
    %126 = vector.extract_strided_slice %107 {offsets = [0, 18], sizes = [8, 64], strides = [1, 1]} : vector<8x82xbf16> to vector<8x64xbf16>
    %127 = vector.broadcast %105 : vector<1x64xbf16> to vector<8x64xbf16>
    %128 = arith.mulf %126, %127 : vector<8x64xbf16>
    %129 = tpu.concatenate %110, %111, %114, %117, %118, %121, %124, %125, %128 in 0 : vector<8x64xbf16>, vector<8x64xbf16>, vector<8x64xbf16>, vector<8x64xbf16>, vector<8x64xbf16>, vector<8x64xbf16>, vector<8x64xbf16>, vector<8x64xbf16>, vector<8x64xbf16> -> vector<72x64xbf16>
    %cst_36 = arith.constant dense<0.000000e+00> : vector<16x64xf32>
    %130 = tpu.matmul %75, %129, %cst_36 {dimension_numbers = #tpu.dot_dimension_numbers<[1], [0], [0], [1], [0, 0, 1, 1], [], []>} : vector<16x72xbf16>, vector<72x64xbf16>, vector<16x64xf32> -> vector<16x64xf32>
    %131 = vector.broadcast %76 : vector<16x1xf32> to vector<16x64xf32>
    %132 = arith.addf %130, %131 : vector<16x64xf32>
    %cst_37 = arith.constant 0.000000e+00 : f32
    %133 = vector.broadcast %cst_37 : f32 to vector<16x64xf32>
    %134 = arith.maximumf %132, %133 : vector<16x64xf32>
    %135 = arith.truncf %134 : vector<16x64xf32> to vector<16x64xbf16>
    %c0_38 = arith.constant 0 : index
    %c0_39 = arith.constant 0 : index
    %136 = vector.load %arg11[%c0_38, %c0_39] : memref<64x16xbf16, #tpu.memory_space<vmem>>, vector<64x16xbf16>
    %137 = vector.extract_strided_slice %135 {offsets = [0, 1], sizes = [16, 63], strides = [1, 1]} : vector<16x64xbf16> to vector<16x63xbf16>
    %cst_40 = arith.constant 0.000000e+00 : bf16
    %138 = vector.broadcast %cst_40 : bf16 to vector<16x1xbf16>
    %139 = tpu.concatenate %137, %138 in 1 : vector<16x63xbf16>, vector<16x1xbf16> -> vector<16x64xbf16>
    %140 = arith.maximumf %135, %139 : vector<16x64xbf16>
    %141 = vector.extract_strided_slice %140 {offsets = [0, 8], sizes = [16, 56], strides = [1, 1]} : vector<16x64xbf16> to vector<16x56xbf16>
    %cst_41 = arith.constant 0.000000e+00 : bf16
    %142 = vector.broadcast %cst_41 : bf16 to vector<16x8xbf16>
    %143 = tpu.concatenate %141, %142 in 1 : vector<16x56xbf16>, vector<16x8xbf16> -> vector<16x64xbf16>
    %144 = arith.maximumf %140, %143 : vector<16x64xbf16>
    %cst_42 = arith.constant dense<0.000000e+00> : vector<16x16xf32>
    %145 = tpu.matmul %144, %136, %cst_42 {dimension_numbers = #tpu.dot_dimension_numbers<[1], [0], [0], [1], [0, 0, 1, 1], [], []>} : vector<16x64xbf16>, vector<64x16xbf16>, vector<16x16xf32> -> vector<16x16xf32>
    %146 = arith.truncf %145 : vector<16x16xf32> to vector<16x16xbf16>
    %c0_43 = arith.constant 0 : index
    %c0_44 = arith.constant 0 : index
    %147 = vector.load %arg12[%c0_43, %c0_44] : memref<16x64xbf16, #tpu.memory_space<vmem>>, vector<16x64xbf16>
    %cst_45 = arith.constant dense<0.000000e+00> : vector<16x64xf32>
    %148 = tpu.matmul %146, %147, %cst_45 {dimension_numbers = #tpu.dot_dimension_numbers<[1], [0], [0], [1], [0, 0, 1, 1], [], []>} : vector<16x16xbf16>, vector<16x64xbf16>, vector<16x64xf32> -> vector<16x64xf32>
    %149 = arith.truncf %148 : vector<16x64xf32> to vector<16x64xbf16>
    %cst_46 = arith.constant dense<0.000000e+00> : vector<16x64xf32>
    %150 = tpu.matmul %146, %147, %cst_46 {dimension_numbers = #tpu.dot_dimension_numbers<[1], [0], [0], [1], [0, 0, 1, 1], [], []>} : vector<16x16xbf16>, vector<16x64xbf16>, vector<16x64xf32> -> vector<16x64xf32>
    %151 = arith.truncf %150 : vector<16x64xf32> to vector<16x64xbf16>
    %c0_47 = arith.constant 0 : index
    %c0_48 = arith.constant 0 : index
    %152 = vector.load %arg6[%c0_47, %c0_48] : memref<16x288xbf16, #tpu.memory_space<vmem>>, vector<16x288xbf16>
    %c0_49 = arith.constant 0 : index
    %c0_50 = arith.constant 0 : index
    %153 = vector.load %arg7[%c0_49, %c0_50] : memref<16x1xf32, #tpu.memory_space<vmem>>, vector<16x1xf32>
    %154 = tpu.iota {dimensions = array<i32: 1>} : vector<1x64xi32>
    %c8_i32_51 = arith.constant 8 : i32
    %c0_i32_52 = arith.constant 0 : i32
    %155 = arith.cmpi eq, %c8_i32_51, %c0_i32_52 : i32
    %c1_i32_53 = arith.constant 1 : i32
    %156 = arith.select %155, %c1_i32_53, %c8_i32_51 : i32
    %157 = vector.broadcast %156 : i32 to vector<1x64xi32>
    %158 = arith.remsi %154, %157 : vector<1x64xi32>
    %c0_i32_54 = arith.constant 0 : i32
    %159 = vector.broadcast %c0_i32_54 : i32 to vector<1x64xi32>
    %160 = arith.cmpi ne, %158, %159 : vector<1x64xi32>
    %c0_i32_55 = arith.constant 0 : i32
    %161 = vector.broadcast %c0_i32_55 : i32 to vector<1x64xi32>
    %162 = arith.cmpi slt, %158, %161 : vector<1x64xi32>
    %c0_i32_56 = arith.constant 0 : i32
    %163 = arith.cmpi slt, %156, %c0_i32_56 : i32
    %164 = vector.broadcast %163 : i1 to vector<1x64xi1>
    %165 = vector.broadcast %164 : vector<1x64xi1> to vector<1x64xi1>
    %166 = arith.xori %162, %165 : vector<1x64xi1>
    %167 = arith.andi %166, %160 : vector<1x64xi1>
    %168 = vector.broadcast %156 : i32 to vector<1x64xi32>
    %169 = arith.addi %158, %168 : vector<1x64xi32>
    %170 = arith.select %167, %169, %158 : vector<1x64xi1>, vector<1x64xi32>
    %c0_i32_57 = arith.constant 0 : i32
    %171 = vector.broadcast %c0_i32_57 : i32 to vector<1x64xi32>
    %172 = arith.cmpi sgt, %170, %171 : vector<1x64xi32>
    %cst_58 = arith.constant 1.000000e+00 : f32
    %cst_59 = arith.constant 0.000000e+00 : f32
    %173 = vector.broadcast %cst_58 : f32 to vector<1x64xf32>
    %174 = vector.broadcast %cst_59 : f32 to vector<1x64xf32>
    %175 = arith.select %172, %173, %174 : vector<1x64xi1>, vector<1x64xf32>
    %176 = arith.truncf %175 : vector<1x64xf32> to vector<1x64xbf16>
    %c7_i32_60 = arith.constant 7 : i32
    %177 = vector.broadcast %c7_i32_60 : i32 to vector<1x64xi32>
    %178 = arith.cmpi slt, %170, %177 : vector<1x64xi32>
    %cst_61 = arith.constant 1.000000e+00 : f32
    %cst_62 = arith.constant 0.000000e+00 : f32
    %179 = vector.broadcast %cst_61 : f32 to vector<1x64xf32>
    %180 = vector.broadcast %cst_62 : f32 to vector<1x64xf32>
    %181 = arith.select %178, %179, %180 : vector<1x64xi1>, vector<1x64xf32>
    %182 = arith.truncf %181 : vector<1x64xf32> to vector<1x64xbf16>
    %cst_63 = arith.constant 0.000000e+00 : bf16
    %183 = vector.broadcast %cst_63 : bf16 to vector<16x9xbf16>
    %184 = tpu.concatenate %183, %149, %183 in 1 : vector<16x9xbf16>, vector<16x64xbf16>, vector<16x9xbf16> -> vector<16x82xbf16>
    %185 = vector.extract_strided_slice %184 {offsets = [0, 0], sizes = [16, 64], strides = [1, 1]} : vector<16x82xbf16> to vector<16x64xbf16>
    %186 = vector.broadcast %176 : vector<1x64xbf16> to vector<16x64xbf16>
    %187 = arith.mulf %185, %186 : vector<16x64xbf16>
    %188 = vector.extract_strided_slice %184 {offsets = [0, 1], sizes = [16, 64], strides = [1, 1]} : vector<16x82xbf16> to vector<16x64xbf16>
    %189 = vector.extract_strided_slice %184 {offsets = [0, 2], sizes = [16, 64], strides = [1, 1]} : vector<16x82xbf16> to vector<16x64xbf16>
    %190 = vector.broadcast %182 : vector<1x64xbf16> to vector<16x64xbf16>
    %191 = arith.mulf %189, %190 : vector<16x64xbf16>
    %192 = vector.extract_strided_slice %184 {offsets = [0, 8], sizes = [16, 64], strides = [1, 1]} : vector<16x82xbf16> to vector<16x64xbf16>
    %193 = vector.broadcast %176 : vector<1x64xbf16> to vector<16x64xbf16>
    %194 = arith.mulf %192, %193 : vector<16x64xbf16>
    %195 = vector.extract_strided_slice %184 {offsets = [0, 9], sizes = [16, 64], strides = [1, 1]} : vector<16x82xbf16> to vector<16x64xbf16>
    %196 = vector.extract_strided_slice %184 {offsets = [0, 10], sizes = [16, 64], strides = [1, 1]} : vector<16x82xbf16> to vector<16x64xbf16>
    %197 = vector.broadcast %182 : vector<1x64xbf16> to vector<16x64xbf16>
    %198 = arith.mulf %196, %197 : vector<16x64xbf16>
    %199 = vector.extract_strided_slice %184 {offsets = [0, 16], sizes = [16, 64], strides = [1, 1]} : vector<16x82xbf16> to vector<16x64xbf16>
    %200 = vector.broadcast %176 : vector<1x64xbf16> to vector<16x64xbf16>
    %201 = arith.mulf %199, %200 : vector<16x64xbf16>
    %202 = vector.extract_strided_slice %184 {offsets = [0, 17], sizes = [16, 64], strides = [1, 1]} : vector<16x82xbf16> to vector<16x64xbf16>
    %203 = vector.extract_strided_slice %184 {offsets = [0, 18], sizes = [16, 64], strides = [1, 1]} : vector<16x82xbf16> to vector<16x64xbf16>
    %204 = vector.broadcast %182 : vector<1x64xbf16> to vector<16x64xbf16>
    %205 = arith.mulf %203, %204 : vector<16x64xbf16>
    %cst_64 = arith.constant 0.000000e+00 : bf16
    %206 = vector.broadcast %cst_64 : bf16 to vector<16x9xbf16>
    %207 = tpu.concatenate %206, %151, %206 in 1 : vector<16x9xbf16>, vector<16x64xbf16>, vector<16x9xbf16> -> vector<16x82xbf16>
    %208 = vector.extract_strided_slice %207 {offsets = [0, 0], sizes = [16, 64], strides = [1, 1]} : vector<16x82xbf16> to vector<16x64xbf16>
    %209 = vector.broadcast %176 : vector<1x64xbf16> to vector<16x64xbf16>
    %210 = arith.mulf %208, %209 : vector<16x64xbf16>
    %211 = vector.extract_strided_slice %207 {offsets = [0, 1], sizes = [16, 64], strides = [1, 1]} : vector<16x82xbf16> to vector<16x64xbf16>
    %212 = vector.extract_strided_slice %207 {offsets = [0, 2], sizes = [16, 64], strides = [1, 1]} : vector<16x82xbf16> to vector<16x64xbf16>
    %213 = vector.broadcast %182 : vector<1x64xbf16> to vector<16x64xbf16>
    %214 = arith.mulf %212, %213 : vector<16x64xbf16>
    %215 = vector.extract_strided_slice %207 {offsets = [0, 8], sizes = [16, 64], strides = [1, 1]} : vector<16x82xbf16> to vector<16x64xbf16>
    %216 = vector.broadcast %176 : vector<1x64xbf16> to vector<16x64xbf16>
    %217 = arith.mulf %215, %216 : vector<16x64xbf16>
    %218 = vector.extract_strided_slice %207 {offsets = [0, 9], sizes = [16, 64], strides = [1, 1]} : vector<16x82xbf16> to vector<16x64xbf16>
    %219 = vector.extract_strided_slice %207 {offsets = [0, 10], sizes = [16, 64], strides = [1, 1]} : vector<16x82xbf16> to vector<16x64xbf16>
    %220 = vector.broadcast %182 : vector<1x64xbf16> to vector<16x64xbf16>
    %221 = arith.mulf %219, %220 : vector<16x64xbf16>
    %222 = vector.extract_strided_slice %207 {offsets = [0, 16], sizes = [16, 64], strides = [1, 1]} : vector<16x82xbf16> to vector<16x64xbf16>
    %223 = vector.broadcast %176 : vector<1x64xbf16> to vector<16x64xbf16>
    %224 = arith.mulf %222, %223 : vector<16x64xbf16>
    %225 = vector.extract_strided_slice %207 {offsets = [0, 17], sizes = [16, 64], strides = [1, 1]} : vector<16x82xbf16> to vector<16x64xbf16>
    %226 = vector.extract_strided_slice %207 {offsets = [0, 18], sizes = [16, 64], strides = [1, 1]} : vector<16x82xbf16> to vector<16x64xbf16>
    %227 = vector.broadcast %182 : vector<1x64xbf16> to vector<16x64xbf16>
    %228 = arith.mulf %226, %227 : vector<16x64xbf16>
    %229 = tpu.concatenate %187, %188, %191, %194, %195, %198, %201, %202, %205, %210, %211, %214, %217, %218, %221, %224 in 0 : vector<16x64xbf16>, vector<16x64xbf16>, vector<16x64xbf16>, vector<16x64xbf16>, vector<16x64xbf16>, vector<16x64xbf16>, vector<16x64xbf16>, vector<16x64xbf16>, vector<16x64xbf16>, vector<16x64xbf16>, vector<16x64xbf16>, vector<16x64xbf16>, vector<16x64xbf16>, vector<16x64xbf16>, vector<16x64xbf16>, vector<16x64xbf16> -> vector<256x64xbf16>
    %230 = tpu.concatenate %225, %228 in 0 : vector<16x64xbf16>, vector<16x64xbf16> -> vector<32x64xbf16>
    %231 = tpu.concatenate %229, %230 in 0 : vector<256x64xbf16>, vector<32x64xbf16> -> vector<288x64xbf16>
    %cst_65 = arith.constant dense<0.000000e+00> : vector<16x64xf32>
    %232 = tpu.matmul %152, %231, %cst_65 {dimension_numbers = #tpu.dot_dimension_numbers<[1], [0], [0], [1], [0, 0, 1, 1], [], []>} : vector<16x288xbf16>, vector<288x64xbf16>, vector<16x64xf32> -> vector<16x64xf32>
    %233 = vector.broadcast %153 : vector<16x1xf32> to vector<16x64xf32>
    %234 = arith.addf %232, %233 : vector<16x64xf32>
    %cst_66 = arith.constant 0.000000e+00 : f32
    %235 = vector.broadcast %cst_66 : f32 to vector<16x64xf32>
    %236 = arith.maximumf %234, %235 : vector<16x64xf32>
    %237 = arith.truncf %236 : vector<16x64xf32> to vector<16x64xbf16>
    %c0_67 = arith.constant 0 : index
    %c0_68 = arith.constant 0 : index
    %238 = vector.load %arg13[%c0_67, %c0_68] : memref<64x256xbf16, #tpu.memory_space<vmem>>, vector<64x256xbf16>
    %cst_69 = arith.constant dense<0.000000e+00> : vector<8x256xf32>
    %239 = tpu.matmul %74, %238, %cst_69 {dimension_numbers = #tpu.dot_dimension_numbers<[1], [0], [0], [1], [0, 0, 1, 1], [], []>} : vector<8x64xbf16>, vector<64x256xbf16>, vector<8x256xf32> -> vector<8x256xf32>
    %240 = arith.truncf %239 : vector<8x256xf32> to vector<8x256xbf16>
    %cst_70 = arith.constant dense<0.000000e+00> : vector<16x256xf32>
    %241 = tpu.matmul %237, %238, %cst_70 {dimension_numbers = #tpu.dot_dimension_numbers<[1], [0], [0], [1], [0, 0, 1, 1], [], []>} : vector<16x64xbf16>, vector<64x256xbf16>, vector<16x256xf32> -> vector<16x256xf32>
    %242 = arith.truncf %241 : vector<16x256xf32> to vector<16x256xbf16>
    %c0_71 = arith.constant 0 : index
    %c0_72 = arith.constant 0 : index
    %243 = vector.load %arg8[%c0_71, %c0_72] : memref<8x216xbf16, #tpu.memory_space<vmem>>, vector<8x216xbf16>
    %c0_73 = arith.constant 0 : index
    %c0_74 = arith.constant 0 : index
    %244 = vector.load %arg9[%c0_73, %c0_74] : memref<8x1xf32, #tpu.memory_space<vmem>>, vector<8x1xf32>
    %245 = tpu.iota {dimensions = array<i32: 1>} : vector<1x256xi32>
    %c16_i32_75 = arith.constant 16 : i32
    %c0_i32_76 = arith.constant 0 : i32
    %246 = arith.cmpi eq, %c16_i32_75, %c0_i32_76 : i32
    %c1_i32_77 = arith.constant 1 : i32
    %247 = arith.select %246, %c1_i32_77, %c16_i32_75 : i32
    %248 = vector.broadcast %247 : i32 to vector<1x256xi32>
    %249 = arith.remsi %245, %248 : vector<1x256xi32>
    %c0_i32_78 = arith.constant 0 : i32
    %250 = vector.broadcast %c0_i32_78 : i32 to vector<1x256xi32>
    %251 = arith.cmpi ne, %249, %250 : vector<1x256xi32>
    %c0_i32_79 = arith.constant 0 : i32
    %252 = vector.broadcast %c0_i32_79 : i32 to vector<1x256xi32>
    %253 = arith.cmpi slt, %249, %252 : vector<1x256xi32>
    %c0_i32_80 = arith.constant 0 : i32
    %254 = arith.cmpi slt, %247, %c0_i32_80 : i32
    %255 = vector.broadcast %254 : i1 to vector<1x256xi1>
    %256 = vector.broadcast %255 : vector<1x256xi1> to vector<1x256xi1>
    %257 = arith.xori %253, %256 : vector<1x256xi1>
    %258 = arith.andi %257, %251 : vector<1x256xi1>
    %259 = vector.broadcast %247 : i32 to vector<1x256xi32>
    %260 = arith.addi %249, %259 : vector<1x256xi32>
    %261 = arith.select %258, %260, %249 : vector<1x256xi1>, vector<1x256xi32>
    %c0_i32_81 = arith.constant 0 : i32
    %262 = vector.broadcast %c0_i32_81 : i32 to vector<1x256xi32>
    %263 = arith.cmpi sgt, %261, %262 : vector<1x256xi32>
    %cst_82 = arith.constant 1.000000e+00 : f32
    %cst_83 = arith.constant 0.000000e+00 : f32
    %264 = vector.broadcast %cst_82 : f32 to vector<1x256xf32>
    %265 = vector.broadcast %cst_83 : f32 to vector<1x256xf32>
    %266 = arith.select %263, %264, %265 : vector<1x256xi1>, vector<1x256xf32>
    %267 = arith.truncf %266 : vector<1x256xf32> to vector<1x256xbf16>
    %c15_i32_84 = arith.constant 15 : i32
    %268 = vector.broadcast %c15_i32_84 : i32 to vector<1x256xi32>
    %269 = arith.cmpi slt, %261, %268 : vector<1x256xi32>
    %cst_85 = arith.constant 1.000000e+00 : f32
    %cst_86 = arith.constant 0.000000e+00 : f32
    %270 = vector.broadcast %cst_85 : f32 to vector<1x256xf32>
    %271 = vector.broadcast %cst_86 : f32 to vector<1x256xf32>
    %272 = arith.select %269, %270, %271 : vector<1x256xi1>, vector<1x256xf32>
    %273 = arith.truncf %272 : vector<1x256xf32> to vector<1x256xbf16>
    %cst_87 = arith.constant 0.000000e+00 : bf16
    %274 = vector.broadcast %cst_87 : bf16 to vector<8x17xbf16>
    %275 = tpu.concatenate %274, %240, %274 in 1 : vector<8x17xbf16>, vector<8x256xbf16>, vector<8x17xbf16> -> vector<8x290xbf16>
    %276 = vector.extract_strided_slice %275 {offsets = [0, 0], sizes = [8, 256], strides = [1, 1]} : vector<8x290xbf16> to vector<8x256xbf16>
    %277 = vector.broadcast %267 : vector<1x256xbf16> to vector<8x256xbf16>
    %278 = arith.mulf %276, %277 : vector<8x256xbf16>
    %279 = vector.extract_strided_slice %275 {offsets = [0, 1], sizes = [8, 256], strides = [1, 1]} : vector<8x290xbf16> to vector<8x256xbf16>
    %280 = vector.extract_strided_slice %275 {offsets = [0, 2], sizes = [8, 256], strides = [1, 1]} : vector<8x290xbf16> to vector<8x256xbf16>
    %281 = vector.broadcast %273 : vector<1x256xbf16> to vector<8x256xbf16>
    %282 = arith.mulf %280, %281 : vector<8x256xbf16>
    %283 = vector.extract_strided_slice %275 {offsets = [0, 16], sizes = [8, 256], strides = [1, 1]} : vector<8x290xbf16> to vector<8x256xbf16>
    %284 = vector.broadcast %267 : vector<1x256xbf16> to vector<8x256xbf16>
    %285 = arith.mulf %283, %284 : vector<8x256xbf16>
    %286 = vector.extract_strided_slice %275 {offsets = [0, 17], sizes = [8, 256], strides = [1, 1]} : vector<8x290xbf16> to vector<8x256xbf16>
    %287 = vector.extract_strided_slice %275 {offsets = [0, 18], sizes = [8, 256], strides = [1, 1]} : vector<8x290xbf16> to vector<8x256xbf16>
    %288 = vector.broadcast %273 : vector<1x256xbf16> to vector<8x256xbf16>
    %289 = arith.mulf %287, %288 : vector<8x256xbf16>
    %290 = vector.extract_strided_slice %275 {offsets = [0, 32], sizes = [8, 256], strides = [1, 1]} : vector<8x290xbf16> to vector<8x256xbf16>
    %291 = vector.broadcast %267 : vector<1x256xbf16> to vector<8x256xbf16>
    %292 = arith.mulf %290, %291 : vector<8x256xbf16>
    %293 = vector.extract_strided_slice %275 {offsets = [0, 33], sizes = [8, 256], strides = [1, 1]} : vector<8x290xbf16> to vector<8x256xbf16>
    %294 = vector.extract_strided_slice %275 {offsets = [0, 34], sizes = [8, 256], strides = [1, 1]} : vector<8x290xbf16> to vector<8x256xbf16>
    %295 = vector.broadcast %273 : vector<1x256xbf16> to vector<8x256xbf16>
    %296 = arith.mulf %294, %295 : vector<8x256xbf16>
    %cst_88 = arith.constant 0.000000e+00 : bf16
    %297 = vector.broadcast %cst_88 : bf16 to vector<16x17xbf16>
    %298 = tpu.concatenate %297, %242, %297 in 1 : vector<16x17xbf16>, vector<16x256xbf16>, vector<16x17xbf16> -> vector<16x290xbf16>
    %299 = vector.extract_strided_slice %298 {offsets = [0, 0], sizes = [16, 256], strides = [1, 1]} : vector<16x290xbf16> to vector<16x256xbf16>
    %300 = vector.broadcast %267 : vector<1x256xbf16> to vector<16x256xbf16>
    %301 = arith.mulf %299, %300 : vector<16x256xbf16>
    %302 = vector.extract_strided_slice %298 {offsets = [0, 1], sizes = [16, 256], strides = [1, 1]} : vector<16x290xbf16> to vector<16x256xbf16>
    %303 = vector.extract_strided_slice %298 {offsets = [0, 2], sizes = [16, 256], strides = [1, 1]} : vector<16x290xbf16> to vector<16x256xbf16>
    %304 = vector.broadcast %273 : vector<1x256xbf16> to vector<16x256xbf16>
    %305 = arith.mulf %303, %304 : vector<16x256xbf16>
    %306 = vector.extract_strided_slice %298 {offsets = [0, 16], sizes = [16, 256], strides = [1, 1]} : vector<16x290xbf16> to vector<16x256xbf16>
    %307 = vector.broadcast %267 : vector<1x256xbf16> to vector<16x256xbf16>
    %308 = arith.mulf %306, %307 : vector<16x256xbf16>
    %309 = vector.extract_strided_slice %298 {offsets = [0, 17], sizes = [16, 256], strides = [1, 1]} : vector<16x290xbf16> to vector<16x256xbf16>
    %310 = vector.extract_strided_slice %298 {offsets = [0, 18], sizes = [16, 256], strides = [1, 1]} : vector<16x290xbf16> to vector<16x256xbf16>
    %311 = vector.broadcast %273 : vector<1x256xbf16> to vector<16x256xbf16>
    %312 = arith.mulf %310, %311 : vector<16x256xbf16>
    %313 = vector.extract_strided_slice %298 {offsets = [0, 32], sizes = [16, 256], strides = [1, 1]} : vector<16x290xbf16> to vector<16x256xbf16>
    %314 = vector.broadcast %267 : vector<1x256xbf16> to vector<16x256xbf16>
    %315 = arith.mulf %313, %314 : vector<16x256xbf16>
    %316 = vector.extract_strided_slice %298 {offsets = [0, 33], sizes = [16, 256], strides = [1, 1]} : vector<16x290xbf16> to vector<16x256xbf16>
    %317 = vector.extract_strided_slice %298 {offsets = [0, 34], sizes = [16, 256], strides = [1, 1]} : vector<16x290xbf16> to vector<16x256xbf16>
    %318 = vector.broadcast %273 : vector<1x256xbf16> to vector<16x256xbf16>
    %319 = arith.mulf %317, %318 : vector<16x256xbf16>
    %320 = tpu.concatenate %278, %279, %282, %285, %286, %289, %292, %293, %296, %301, %302, %305, %308, %309, %312, %315 in 0 : vector<8x256xbf16>, vector<8x256xbf16>, vector<8x256xbf16>, vector<8x256xbf16>, vector<8x256xbf16>, vector<8x256xbf16>, vector<8x256xbf16>, vector<8x256xbf16>, vector<8x256xbf16>, vector<16x256xbf16>, vector<16x256xbf16>, vector<16x256xbf16>, vector<16x256xbf16>, vector<16x256xbf16>, vector<16x256xbf16>, vector<16x256xbf16> -> vector<184x256xbf16>
    %321 = tpu.concatenate %316, %319 in 0 : vector<16x256xbf16>, vector<16x256xbf16> -> vector<32x256xbf16>
    %322 = tpu.concatenate %320, %321 in 0 : vector<184x256xbf16>, vector<32x256xbf16> -> vector<216x256xbf16>
    %cst_89 = arith.constant dense<0.000000e+00> : vector<8x256xf32>
    %323 = tpu.matmul %243, %322, %cst_89 {dimension_numbers = #tpu.dot_dimension_numbers<[1], [0], [0], [1], [0, 0, 1, 1], [], []>} : vector<8x216xbf16>, vector<216x256xbf16>, vector<8x256xf32> -> vector<8x256xf32>
    %324 = vector.broadcast %244 : vector<8x1xf32> to vector<8x256xf32>
    %325 = arith.addf %323, %324 : vector<8x256xf32>
    %cst_90 = arith.constant 0.000000e+00 : f32
    %326 = vector.broadcast %cst_90 : f32 to vector<8x256xf32>
    %327 = arith.maximumf %325, %326 : vector<8x256xf32>
    %c0_91 = arith.constant 0 : index
    %c0_92 = arith.constant 0 : index
    %c0_93 = arith.constant 0 : index
    %328 = vector.load %arg14[%c0_91, %c0_92, %c0_93] : memref<1x8x256xf32, #tpu.memory_space<vmem>>, vector<1x8x256xf32>
    %329 = vector.shape_cast %328 : vector<1x8x256xf32> to vector<8x256xf32>
    %330 = vector.shape_cast %327 : vector<8x256xf32> to vector<1x8x256xf32>
    tpu.vector_store %arg14[%c0_91, %c0_92, %c0_93], %330 {strides = array<i32>} : memref<1x8x256xf32, #tpu.memory_space<vmem>>, vector<1x8x256xf32>,
    return
  }
  func.func @transform_0(%arg0: i32) -> (i32, i32, i32) {
    %c0_i32 = arith.constant 0 : i32
    %c0_i32_0 = arith.constant 0 : i32
    %c0_i32_1 = arith.constant 0 : i32
    return %arg0, %c0_i32, %c0_i32_0 : i32, i32, i32
  }
  func.func @transform_1(%arg0: i32) -> (i32, i32) {
    %c0_i32 = arith.constant 0 : i32
    %c0_i32_0 = arith.constant 0 : i32
    %c0_i32_1 = arith.constant 0 : i32
    return %c0_i32, %c0_i32_0 : i32, i32
  }
  func.func @transform_2(%arg0: i32) -> (i32, i32) {
    %c0_i32 = arith.constant 0 : i32
    %c0_i32_0 = arith.constant 0 : i32
    %c0_i32_1 = arith.constant 0 : i32
    return %c0_i32, %c0_i32_0 : i32, i32
  }
  func.func @transform_3(%arg0: i32) -> (i32, i32) {
    %c0_i32 = arith.constant 0 : i32
    %c0_i32_0 = arith.constant 0 : i32
    %c0_i32_1 = arith.constant 0 : i32
    return %c0_i32, %c0_i32_0 : i32, i32
  }
  func.func @transform_4(%arg0: i32) -> (i32, i32) {
    %c0_i32 = arith.constant 0 : i32
    %c0_i32_0 = arith.constant 0 : i32
    %c0_i32_1 = arith.constant 0 : i32
    return %c0_i32, %c0_i32_0 : i32, i32
  }
  func.func @transform_5(%arg0: i32) -> (i32, i32) {
    %c0_i32 = arith.constant 0 : i32
    %c0_i32_0 = arith.constant 0 : i32
    %c0_i32_1 = arith.constant 0 : i32
    return %c0_i32, %c0_i32_0 : i32, i32
  }
  func.func @transform_6(%arg0: i32) -> (i32, i32) {
    %c0_i32 = arith.constant 0 : i32
    %c0_i32_0 = arith.constant 0 : i32
    %c0_i32_1 = arith.constant 0 : i32
    return %c0_i32, %c0_i32_0 : i32, i32
  }
  func.func @transform_7(%arg0: i32) -> (i32, i32) {
    %c0_i32 = arith.constant 0 : i32
    %c0_i32_0 = arith.constant 0 : i32
    %c0_i32_1 = arith.constant 0 : i32
    return %c0_i32, %c0_i32_0 : i32, i32
  }
  func.func @transform_8(%arg0: i32) -> (i32, i32) {
    %c0_i32 = arith.constant 0 : i32
    %c0_i32_0 = arith.constant 0 : i32
    %c0_i32_1 = arith.constant 0 : i32
    return %c0_i32, %c0_i32_0 : i32, i32
  }
  func.func @transform_9(%arg0: i32) -> (i32, i32) {
    %c0_i32 = arith.constant 0 : i32
    %c0_i32_0 = arith.constant 0 : i32
    %c0_i32_1 = arith.constant 0 : i32
    return %c0_i32, %c0_i32_0 : i32, i32
  }
  func.func @transform_10(%arg0: i32) -> (i32, i32) {
    %c0_i32 = arith.constant 0 : i32
    %c0_i32_0 = arith.constant 0 : i32
    %c0_i32_1 = arith.constant 0 : i32
    return %c0_i32, %c0_i32_0 : i32, i32
  }
  func.func @transform_11(%arg0: i32) -> (i32, i32) {
    %c0_i32 = arith.constant 0 : i32
    %c0_i32_0 = arith.constant 0 : i32
    %c0_i32_1 = arith.constant 0 : i32
    return %c0_i32, %c0_i32_0 : i32, i32
  }
  func.func @transform_12(%arg0: i32) -> (i32, i32) {
    %c0_i32 = arith.constant 0 : i32
    %c0_i32_0 = arith.constant 0 : i32
    %c0_i32_1 = arith.constant 0 : i32
    return %c0_i32, %c0_i32_0 : i32, i32
  }
  func.func @transform_13(%arg0: i32) -> (i32, i32, i32) {
    %c0_i32 = arith.constant 0 : i32
    %c0_i32_0 = arith.constant 0 : i32
    %c0_i32_1 = arith.constant 0 : i32
    return %arg0, %c0_i32, %c0_i32_0 : i32, i32, i32
  }
}

</mosaic_0001>

<llo_original>
// kernel: unet_forward.1
$region0: #{unet_forward.1}
  #allocation0 [shape = 'u32[]', space=smem, size = 0x4, offset = 0x4, fixed_abs, tag = 'smem constant byte address 0x4 - core index']
  #allocation1 [shape = 'u32[144,128]{1,0:T(1,128)}', space=vmem, size = 0x12000, scoped, tag = 'internal scratch']
  %s0 = inlined_call_operand.vmem [shape: f32[2,4,256], index: 0, kind: input, shape index: {}]
  %s1 = inlined_call_operand.vmem [shape: bf16[8,36], index: 1, kind: input, shape index: {}]
  %s2 = inlined_call_operand.vmem [shape: f32[8,1], index: 2, kind: input, shape index: {}]
  %s3 = inlined_call_operand.vmem [shape: bf16[16,72], index: 3, kind: input, shape index: {}]
  %s4 = inlined_call_operand.vmem [shape: f32[16,1], index: 4, kind: input, shape index: {}]
  %s5 = inlined_call_operand.vmem [shape: bf16[16,288], index: 5, kind: input, shape index: {}]
  %s6 = inlined_call_operand.vmem [shape: f32[16,1], index: 6, kind: input, shape index: {}]
  %s7 = inlined_call_operand.vmem [shape: bf16[8,216], index: 7, kind: input, shape index: {}]
  %s8 = inlined_call_operand.vmem [shape: f32[8,1], index: 8, kind: input, shape index: {}]
  %s9 = inlined_call_operand.vmem [shape: bf16[256,64], index: 9, kind: input, shape index: {}]
  %s10 = inlined_call_operand.vmem [shape: bf16[64,16], index: 10, kind: input, shape index: {}]
  %s11 = inlined_call_operand.vmem [shape: bf16[16,64], index: 11, kind: input, shape index: {}]
  %s12 = inlined_call_operand.vmem [shape: bf16[64,256], index: 12, kind: input, shape index: {}]
  %s13 = inlined_call_operand.vmem [shape: f32[2,8,256], index: 13, kind: output, shape index: {}]
  %s14 = sld [smem:[#allocation0]]
  $region85: #{unet_forward.1} parent=0
    _
  %s16 = ssub.s32 1, %s14
  %s17 = scalar_select 0, %s16, %s14
  loop: start=0, step=1, limit=4
  $region2: #{unet_forward.1} parent=0 // loop_pre_header
    _
  $region3: #{unet_forward.1} parent=0 // loop_header
    %s19 = sphi 0, %s23
    %p20 = scmp.ge.s32.totalorder %s19, 4
    %s29 = sphi 0, %s31
    %s32 = sphi 0, %s29
    %s33 = sphi 0, %s32
    %s49 = sphi 0, %s33
    %s53 = sphi 0, %s53
    %s55 = sphi 0, %s53
    %s56 = sphi 0, %s55
    %s70 = sphi 0, %s56
    %s74 = sphi 0, %s74
    %s76 = sphi 0, %s74
    %s77 = sphi 0, %s76
    %s91 = sphi 0, %s77
    %s95 = sphi 0, %s95
    %s97 = sphi 0, %s95
    %s98 = sphi 0, %s97
    %s112 = sphi 0, %s98
    %s116 = sphi 0, %s116
    %s118 = sphi 0, %s116
    %s119 = sphi 0, %s118
    %s133 = sphi 0, %s119
    %s137 = sphi 0, %s137
    %s139 = sphi 0, %s137
    %s140 = sphi 0, %s139
    %s154 = sphi 0, %s140
    %s158 = sphi 0, %s158
    %s160 = sphi 0, %s158
    %s161 = sphi 0, %s160
    %s175 = sphi 0, %s161
    %s179 = sphi 0, %s179
    %s181 = sphi 0, %s179
    %s182 = sphi 0, %s181
    %s196 = sphi 0, %s182
    %s200 = sphi 0, %s200
    %s202 = sphi 0, %s200
    %s203 = sphi 0, %s202
    %s217 = sphi 0, %s203
    %s221 = sphi 0, %s221
    %s223 = sphi 0, %s221
    %s224 = sphi 0, %s223
    %s238 = sphi 0, %s224
    %s242 = sphi 0, %s242
    %s244 = sphi 0, %s242
    %s245 = sphi 0, %s244
    %s259 = sphi 0, %s245
    %s263 = sphi 0, %s263
    %s265 = sphi 0, %s263
    %s266 = sphi 0, %s265
    %s280 = sphi 0, %s266
    %s284 = sphi 0, %s284
    %s286 = sphi 0, %s284
    %s287 = sphi 0, %s286
    %s301 = sphi 0, %s287
    %s307 = sphi 0, %s309
    %s310 = sphi 0, %s307
    %s311 = sphi 0, %s310
    %s327 = sphi 0, %s311
  $region4: #{unet_forward.1} parent=0 // loop_header_branch
    %22 = sbr.rel (%p20) target = $region8
  $region5: #{unet_forward.1} parent=0 // loop_body
    %s24 = ssub.s32 %s19, 1
    %s25 = ssub.s32 %s19, 2
    %s26 = sadd.s32 %s19, 1
    %s27 = ssub.s32 %s19, %s26
    %p28 = scmp.eq.s32.totalorder %s27, 0
    %s30 = sadd.s32 %s29, 1
    %s31 = scalar_select %p28, %s29, %s30
    %p34 = pneg %p28
    %p35 = scmp.eq.s32.totalorder %s19, 1
    %p36 = por %p34, %p35
    %p37 = scmp.ne.s32.totalorder %s29, %s32
    %p38 = scmp.eq.s32.totalorder %s19, 0
    %p39 = por %p37, %p38
    %p40 = scmp.ne.s32.totalorder %s29, %s32
    %p41 = scmp.eq.s32.totalorder %s24, 1
    %p42 = por %p40, %p41
    %p43 = scmp.ne.s32.totalorder %s32, %s33
    %p44 = scmp.eq.s32.totalorder %s24, 0
    %p45 = por %p43, %p44
    %p46 = scmp.ne.s32.totalorder %s32, %s33
    %p47 = scmp.eq.s32.totalorder %s25, 1
    %p48 = por %p46, %p47
    %p50 = scmp.ne.s32.totalorder %s33, %s49
    %p51 = scmp.eq.s32.totalorder %s25, 0
    %p52 = por %p50, %p51
    %s54 = sadd.s32 %s53, 1
    %p57 = scmp.eq.s32.totalorder %s19, 1
    %p58 = scmp.ne.s32.totalorder %s53, %s55
    %p59 = scmp.eq.s32.totalorder %s19, 0
    %p60 = por %p58, %p59
    %p61 = scmp.ne.s32.totalorder %s53, %s55
    %p62 = scmp.eq.s32.totalorder %s24, 1
    %p63 = por %p61, %p62
    %p64 = scmp.ne.s32.totalorder %s55, %s56
    %p65 = scmp.eq.s32.totalorder %s24, 0
    %p66 = por %p64, %p65
    %p67 = scmp.ne.s32.totalorder %s55, %s56
    %p68 = scmp.eq.s32.totalorder %s25, 1
    %p69 = por %p67, %p68
    %p71 = scmp.ne.s32.totalorder %s56, %s70
    %p72 = scmp.eq.s32.totalorder %s25, 0
    %p73 = por %p71, %p72
    %s75 = sadd.s32 %s74, 1
    %p78 = scmp.eq.s32.totalorder %s19, 1
    %p79 = scmp.ne.s32.totalorder %s74, %s76
    %p80 = scmp.eq.s32.totalorder %s19, 0
    %p81 = por %p79, %p80
    %p82 = scmp.ne.s32.totalorder %s74, %s76
    %p83 = scmp.eq.s32.totalorder %s24, 1
    %p84 = por %p82, %p83
    %p85 = scmp.ne.s32.totalorder %s76, %s77
    %p86 = scmp.eq.s32.totalorder %s24, 0
    %p87 = por %p85, %p86
    %p88 = scmp.ne.s32.totalorder %s76, %s77
    %p89 = scmp.eq.s32.totalorder %s25, 1
    %p90 = por %p88, %p89
    %p92 = scmp.ne.s32.totalorder %s77, %s91
    %p93 = scmp.eq.s32.totalorder %s25, 0
    %p94 = por %p92, %p93
    %s96 = sadd.s32 %s95, 1
    %p99 = scmp.eq.s32.totalorder %s19, 1
    %p100 = scmp.ne.s32.totalorder %s95, %s97
    %p101 = scmp.eq.s32.totalorder %s19, 0
    %p102 = por %p100, %p101
    %p103 = scmp.ne.s32.totalorder %s95, %s97
    %p104 = scmp.eq.s32.totalorder %s24, 1
    %p105 = por %p103, %p104
    %p106 = scmp.ne.s32.totalorder %s97, %s98
    %p107 = scmp.eq.s32.totalorder %s24, 0
    %p108 = por %p106, %p107
    %p109 = scmp.ne.s32.totalorder %s97, %s98
    %p110 = scmp.eq.s32.totalorder %s25, 1
    %p111 = por %p109, %p110
    %p113 = scmp.ne.s32.totalorder %s98, %s112
    %p114 = scmp.eq.s32.totalorder %s25, 0
    %p115 = por %p113, %p114
    %s117 = sadd.s32 %s116, 1
    %p120 = scmp.eq.s32.totalorder %s19, 1
    %p121 = scmp.ne.s32.totalorder %s116, %s118
    %p122 = scmp.eq.s32.totalorder %s19, 0
    %p123 = por %p121, %p122
    %p124 = scmp.ne.s32.totalorder %s116, %s118
    %p125 = scmp.eq.s32.totalorder %s24, 1
    %p126 = por %p124, %p125
    %p127 = scmp.ne.s32.totalorder %s118, %s119
    %p128 = scmp.eq.s32.totalorder %s24, 0
    %p129 = por %p127, %p128
    %p130 = scmp.ne.s32.totalorder %s118, %s119
    %p131 = scmp.eq.s32.totalorder %s25, 1
    %p132 = por %p130, %p131
    %p134 = scmp.ne.s32.totalorder %s119, %s133
    %p135 = scmp.eq.s32.totalorder %s25, 0
    %p136 = por %p134, %p135
    %s138 = sadd.s32 %s137, 1
    %p141 = scmp.eq.s32.totalorder %s19, 1
    %p142 = scmp.ne.s32.totalorder %s137, %s139
    %p143 = scmp.eq.s32.totalorder %s19, 0
    %p144 = por %p142, %p143
    %p145 = scmp.ne.s32.totalorder %s137, %s139
    %p146 = scmp.eq.s32.totalorder %s24, 1
    %p147 = por %p145, %p146
    %p148 = scmp.ne.s32.totalorder %s139, %s140
    %p149 = scmp.eq.s32.totalorder %s24, 0
    %p150 = por %p148, %p149
    %p151 = scmp.ne.s32.totalorder %s139, %s140
    %p152 = scmp.eq.s32.totalorder %s25, 1
    %p153 = por %p151, %p152
    %p155 = scmp.ne.s32.totalorder %s140, %s154
    %p156 = scmp.eq.s32.totalorder %s25, 0
    %p157 = por %p155, %p156
    %s159 = sadd.s32 %s158, 1
    %p162 = scmp.eq.s32.totalorder %s19, 1
    %p163 = scmp.ne.s32.totalorder %s158, %s160
    %p164 = scmp.eq.s32.totalorder %s19, 0
    %p165 = por %p163, %p164
    %p166 = scmp.ne.s32.totalorder %s158, %s160
    %p167 = scmp.eq.s32.totalorder %s24, 1
    %p168 = por %p166, %p167
    %p169 = scmp.ne.s32.totalorder %s160, %s161
    %p170 = scmp.eq.s32.totalorder %s24, 0
    %p171 = por %p169, %p170
    %p172 = scmp.ne.s32.totalorder %s160, %s161
    %p173 = scmp.eq.s32.totalorder %s25, 1
    %p174 = por %p172, %p173
    %p176 = scmp.ne.s32.totalorder %s161, %s175
    %p177 = scmp.eq.s32.totalorder %s25, 0
    %p178 = por %p176, %p177
    %s180 = sadd.s32 %s179, 1
    %p183 = scmp.eq.s32.totalorder %s19, 1
    %p184 = scmp.ne.s32.totalorder %s179, %s181
    %p185 = scmp.eq.s32.totalorder %s19, 0
    %p186 = por %p184, %p185
    %p187 = scmp.ne.s32.totalorder %s179, %s181
    %p188 = scmp.eq.s32.totalorder %s24, 1
    %p189 = por %p187, %p188
    %p190 = scmp.ne.s32.totalorder %s181, %s182
    %p191 = scmp.eq.s32.totalorder %s24, 0
    %p192 = por %p190, %p191
    %p193 = scmp.ne.s32.totalorder %s181, %s182
    %p194 = scmp.eq.s32.totalorder %s25, 1
    %p195 = por %p193, %p194
    %p197 = scmp.ne.s32.totalorder %s182, %s196
    %p198 = scmp.eq.s32.totalorder %s25, 0
    %p199 = por %p197, %p198
    %s201 = sadd.s32 %s200, 1
    %p204 = scmp.eq.s32.totalorder %s19, 1
    %p205 = scmp.ne.s32.totalorder %s200, %s202
    %p206 = scmp.eq.s32.totalorder %s19, 0
    %p207 = por %p205, %p206
    %p208 = scmp.ne.s32.totalorder %s200, %s202
    %p209 = scmp.eq.s32.totalorder %s24, 1
    %p210 = por %p208, %p209
    %p211 = scmp.ne.s32.totalorder %s202, %s203
    %p212 = scmp.eq.s32.totalorder %s24, 0
    %p213 = por %p211, %p212
    %p214 = scmp.ne.s32.totalorder %s202, %s203
    %p215 = scmp.eq.s32.totalorder %s25, 1
    %p216 = por %p214, %p215
    %p218 = scmp.ne.s32.totalorder %s203, %s217
    %p219 = scmp.eq.s32.totalorder %s25, 0
    %p220 = por %p218, %p219
    %s222 = sadd.s32 %s221, 1
    %p225 = scmp.eq.s32.totalorder %s19, 1
    %p226 = scmp.ne.s32.totalorder %s221, %s223
    %p227 = scmp.eq.s32.totalorder %s19, 0
    %p228 = por %p226, %p227
    %p229 = scmp.ne.s32.totalorder %s221, %s223
    %p230 = scmp.eq.s32.totalorder %s24, 1
    %p231 = por %p229, %p230
    %p232 = scmp.ne.s32.totalorder %s223, %s224
    %p233 = scmp.eq.s32.totalorder %s24, 0
    %p234 = por %p232, %p233
    %p235 = scmp.ne.s32.totalorder %s223, %s224
    %p236 = scmp.eq.s32.totalorder %s25, 1
    %p237 = por %p235, %p236
    %p239 = scmp.ne.s32.totalorder %s224, %s238
    %p240 = scmp.eq.s32.totalorder %s25, 0
    %p241 = por %p239, %p240
    %s243 = sadd.s32 %s242, 1
    %p246 = scmp.eq.s32.totalorder %s19, 1
    %p247 = scmp.ne.s32.totalorder %s242, %s244
    %p248 = scmp.eq.s32.totalorder %s19, 0
    %p249 = por %p247, %p248
    %p250 = scmp.ne.s32.totalorder %s242, %s244
    %p251 = scmp.eq.s32.totalorder %s24, 1
    %p252 = por %p250, %p251
    %p253 = scmp.ne.s32.totalorder %s244, %s245
    %p254 = scmp.eq.s32.totalorder %s24, 0
    %p255 = por %p253, %p254
    %p256 = scmp.ne.s32.totalorder %s244, %s245
    %p257 = scmp.eq.s32.totalorder %s25, 1
    %p258 = por %p256, %p257
    %p260 = scmp.ne.s32.totalorder %s245, %s259
    %p261 = scmp.eq.s32.totalorder %s25, 0
    %p262 = por %p260, %p261
    %s264 = sadd.s32 %s263, 1
    %p267 = scmp.eq.s32.totalorder %s19, 1
    %p268 = scmp.ne.s32.totalorder %s263, %s265
    %p269 = scmp.eq.s32.totalorder %s19, 0
    %p270 = por %p268, %p269
    %p271 = scmp.ne.s32.totalorder %s263, %s265
    %p272 = scmp.eq.s32.totalorder %s24, 1
    %p273 = por %p271, %p272
    %p274 = scmp.ne.s32.totalorder %s265, %s266
    %p275 = scmp.eq.s32.totalorder %s24, 0
    %p276 = por %p274, %p275
    %p277 = scmp.ne.s32.totalorder %s265, %s266
    %p278 = scmp.eq.s32.totalorder %s25, 1
    %p279 = por %p277, %p278
    %p281 = scmp.ne.s32.totalorder %s266, %s280
    %p282 = scmp.eq.s32.totalorder %s25, 0
    %p283 = por %p281, %p282
    %s285 = sadd.s32 %s284, 1
    %p288 = scmp.eq.s32.totalorder %s19, 1
    %p289 = scmp.ne.s32.totalorder %s284, %s286
    %p290 = scmp.eq.s32.totalorder %s19, 0
    %p291 = por %p289, %p290
    %p292 = scmp.ne.s32.totalorder %s284, %s286
    %p293 = scmp.eq.s32.totalorder %s24, 1
    %p294 = por %p292, %p293
    %p295 = scmp.ne.s32.totalorder %s286, %s287
    %p296 = scmp.eq.s32.totalorder %s24, 0
    %p297 = por %p295, %p296
    %p298 = scmp.ne.s32.totalorder %s286, %s287
    %p299 = scmp.eq.s32.totalorder %s25, 1
    %p300 = por %p298, %p299
    %p302 = scmp.ne.s32.totalorder %s287, %s301
    %p303 = scmp.eq.s32.totalorder %s25, 0
    %p304 = por %p302, %p303
    %s305 = ssub.s32 %s19, %s26
    %p306 = scmp.eq.s32.totalorder %s305, 0
    %s308 = sadd.s32 %s307, 1
    %s309 = scalar_select %p306, %s307, %s308
    %p312 = pneg %p306
    %p313 = scmp.eq.s32.totalorder %s19, 1
    %p314 = por %p312, %p313
    %p315 = scmp.ne.s32.totalorder %s307, %s310
    %p316 = scmp.eq.s32.totalorder %s19, 0
    %p317 = por %p315, %p316
    %p318 = scmp.ne.s32.totalorder %s307, %s310
    %p319 = scmp.eq.s32.totalorder %s24, 1
    %p320 = por %p318, %p319
    %p321 = scmp.ne.s32.totalorder %s310, %s311
    %p322 = scmp.eq.s32.totalorder %s24, 0
    %p323 = por %p321, %p322
    %p324 = scmp.ne.s32.totalorder %s310, %s311
    %p325 = scmp.eq.s32.totalorder %s25, 1
    %p326 = por %p324, %p325
    %p328 = scmp.ne.s32.totalorder %s311, %s327
    %p329 = scmp.eq.s32.totalorder %s25, 0
    %p330 = por %p328, %p329
    %p331 = scmp.le.s32.totalorder 1, %s19
    %p332 = scmp.lt.s32.totalorder %s19, 3
    %p333 = pnand %p331, %p332
    %p334 = pneg %p333
    // Predicated region
    $region9: #{unet_forward.1} parent=5 // pred_check
      _
    $region10: #{unet_forward.1} parent=5 // pred_check_branch
      %336 = sbr.rel (%p333) target = $region12
    $region11: #{unet_forward.1} parent=5 // pred_region
      %s337 = ssub.s32 %s19, 1
      // Predicated region
      $region13: #{unet_forward.1} parent=11 // pred_check
        %p338 = pneg %p66
      $region14: #{unet_forward.1} parent=11 // pred_check_branch
        %340 = sbr.rel (%p338) target = $region16
      $region15: #{unet_forward.1} parent=11 // pred_region
        _
      $region16: #{unet_forward.1} parent=11 // pred_fallthru
        _
      // Predicated region
      $region17: #{unet_forward.1} parent=11 // pred_check
        %p341 = pneg %p87
      $region18: #{unet_forward.1} parent=11 // pred_check_branch
        %343 = sbr.rel (%p341) target = $region20
      $region19: #{unet_forward.1} parent=11 // pred_region
        _
      $region20: #{unet_forward.1} parent=11 // pred_fallthru
        _
      // Predicated region
      $region21: #{unet_forward.1} parent=11 // pred_check
        %p344 = pneg %p108
      $region22: #{unet_forward.1} parent=11 // pred_check_branch
        %346 = sbr.rel (%p344) target = $region24
      $region23: #{unet_forward.1} parent=11 // pred_region
        _
      $region24: #{unet_forward.1} parent=11 // pred_fallthru
        _
      // Predicated region
      $region25: #{unet_forward.1} parent=11 // pred_check
        %p347 = pneg %p129
      $region26: #{unet_forward.1} parent=11 // pred_check_branch
        %349 = sbr.rel (%p347) target = $region28
      $region27: #{unet_forward.1} parent=11 // pred_region
        _
      $region28: #{unet_forward.1} parent=11 // pred_fallthru
        _
      // Predicated region
      $region29: #{unet_forward.1} parent=11 // pred_check
        %p350 = pneg %p150
      $region30: #{unet_forward.1} parent=11 // pred_check_branch
        %352 = sbr.rel (%p350) target = $region32
      $region31: #{unet_forward.1} parent=11 // pred_region
        _
      $region32: #{unet_forward.1} parent=11 // pred_fallthru
        _
      // Predicated region
      $region33: #{unet_forward.1} parent=11 // pred_check
        %p353 = pneg %p171
      $region34: #{unet_forward.1} parent=11 // pred_check_branch
        %355 = sbr.rel (%p353) target = $region36
      $region35: #{unet_forward.1} parent=11 // pred_region
        _
      $region36: #{unet_forward.1} parent=11 // pred_fallthru
        _
      // Predicated region
      $region37: #{unet_forward.1} parent=11 // pred_check
        %p356 = pneg %p192
      $region38: #{unet_forward.1} parent=11 // pred_check_branch
        %358 = sbr.rel (%p356) target = $region40
      $region39: #{unet_forward.1} parent=11 // pred_region
        _
      $region40: #{unet_forward.1} parent=11 // pred_fallthru
        _
      // Predicated region
      $region41: #{unet_forward.1} parent=11 // pred_check
        %p359 = pneg %p213
      $region42: #{unet_forward.1} parent=11 // pred_check_branch
        %361 = sbr.rel (%p359) target = $region44
      $region43: #{unet_forward.1} parent=11 // pred_region
        _
      $region44: #{unet_forward.1} parent=11 // pred_fallthru
        _
      // Predicated region
      $region45: #{unet_forward.1} parent=11 // pred_check
        %p362 = pneg %p234
      $region46: #{unet_forward.1} parent=11 // pred_check_branch
        %364 = sbr.rel (%p362) target = $region48
      $region47: #{unet_forward.1} parent=11 // pred_region
        _
      $region48: #{unet_forward.1} parent=11 // pred_fallthru
        _
      // Predicated region
      $region49: #{unet_forward.1} parent=11 // pred_check
        %p365 = pneg %p255
      $region50: #{unet_forward.1} parent=11 // pred_check_branch
        %367 = sbr.rel (%p365) target = $region52
      $region51: #{unet_forward.1} parent=11 // pred_region
        _
      $region52: #{unet_forward.1} parent=11 // pred_fallthru
        _
      // Predicated region
      $region53: #{unet_forward.1} parent=11 // pred_check
        %p368 = pneg %p276
      $region54: #{unet_forward.1} parent=11 // pred_check_branch
        %370 = sbr.rel (%p368) target = $region56
      $region55: #{unet_forward.1} parent=11 // pred_region
        _
      $region56: #{unet_forward.1} parent=11 // pred_fallthru
        _
      // Predicated region
      $region57: #{unet_forward.1} parent=11 // pred_check
        %p371 = pneg %p297
      $region58: #{unet_forward.1} parent=11 // pred_check_branch
        %373 = sbr.rel (%p371) target = $region60
      $region59: #{unet_forward.1} parent=11 // pred_region
        _
      $region60: #{unet_forward.1} parent=11 // pred_fallthru
        _
    $region12: #{unet_forward.1} parent=5 // pred_fallthru
      _
    %p374 = scmp.lt.s32.totalorder %s19, 2
    // Predicated region
    $region61: #{unet_forward.1} parent=5 // pred_check
      %p375 = pneg %p374
    $region62: #{unet_forward.1} parent=5 // pred_check_branch
      %377 = sbr.rel (%p375) target = $region64
    $region63: #{unet_forward.1} parent=5 // pred_region
      // Predicated region
      $region65: #{unet_forward.1} parent=63 // pred_check
        %p378 = pneg %p39
      $region66: #{unet_forward.1} parent=63 // pred_check_branch
        %380 = sbr.rel (%p378) target = $region68
      $region67: #{unet_forward.1} parent=63 // pred_region
        %p381 = scmp.lt.s32.totalorder %s19, 1
        %s382 = scalar_select %p381, %s19, 1
        %s383 = smul.addr %s382, 2
        %s384 = smul.addr %s383, 4
        %s385 = scalar_lea.vmem %s0, %s384
      $region68: #{unet_forward.1} parent=63 // pred_fallthru
        _
    $region64: #{unet_forward.1} parent=5 // pred_fallthru
      _
    %p386 = scmp.le.s32.totalorder 1, %s19
    %p387 = scmp.lt.s32.totalorder %s19, 3
    %p388 = pnand %p386, %p387
    %p389 = pneg %p388
    // Predicated region
    $region69: #{unet_forward.1} parent=5 // pred_check
      _
    $region70: #{unet_forward.1} parent=5 // pred_check_branch
      %391 = sbr.rel (%p388) target = $region72
    $region71: #{unet_forward.1} parent=5 // pred_region
      %s392 = ssub.s32 %s19, 1
      %p393 = scmp.lt.s32.totalorder %s24, 1
      %s394 = scalar_select %p393, %s24, 1
      %s395 = smul.addr %s394, 2
      %s396 = smul.addr %s395, 4
      %s397 = scalar_lea.vmem %s0, %s396
      %p398 = pneg %p45
      %p399 = pneg %p42
      %p400 = pneg %p66
      %p401 = pneg %p63
      %p402 = pneg %p87
      %p403 = pneg %p84
      %p404 = pneg %p108
      %p405 = pneg %p105
      %p406 = pneg %p129
      %p407 = pneg %p126
      %p408 = pneg %p150
      %p409 = pneg %p147
      %p410 = pneg %p171
      %p411 = pneg %p168
      %p412 = pneg %p192
      %p413 = pneg %p189
      %p414 = pneg %p213
      %p415 = pneg %p210
      %p416 = pneg %p234
      %p417 = pneg %p231
      %p418 = pneg %p255
      %p419 = pneg %p252
      %p420 = pneg %p276
      %p421 = pneg %p273
      %p422 = pneg %p297
      %p423 = pneg %p294
      %p424 = pneg %p323
      %p425 = pneg %p320
      %p426 = scmp.lt.s32.totalorder %s24, 1
      %s427 = scalar_select %p426, %s24, 1
      %s428 = smul.addr %s427, 2
      %s429 = smul.addr %s428, 8
      %s430 = scalar_lea.vmem %s13, %s429
      %p431 = scmp.lt.s32.totalorder %s24, 1
      %s432 = scalar_select %p431, %s24, 1
      %s433 = smul.addr %s432, 2
      %s434 = smul.addr %s433, 4
      %s435 = scalar_lea.vmem %s0, %s434
      %p436 = scmp.lt.s32.totalorder %s24, 1
      %s437 = scalar_select %p436, %s24, 1
      %s438 = smul.addr %s437, 2
      %s439 = smul.addr %s438, 8
      %s440 = scalar_lea.vmem %s13, %s439
      %v442 = vld [vmem:[%s435] sm:$0xff]
      %v444 = vcombine.high %v442, %v442
      %v446 = vpack.c.bf16 %v442, %v442
      %v447 = vpack.c.bf16 %v444, %v444
      %v448 = vld [vmem:[%s1] sm:$0xf]
      %v449 = vld [vmem:[%s2] sm:$0xff]
      %v450 = vlaneseq
      %v451 = vand.u32 %v450, 127
      %v452 = vadd.s32 %v451, 128
      %vm453 = vcmp.lt.s32.totalorder %v451, 0
      %v454 = vsub.s32 0, %v451
      %v455 = vsel %vm453, %v454, %v451
      %v456 = vshrl.u32 %v455, 4
      %v457 = vand.u32 %v455, 15
      %v458 = vsub.s32 0, %v457
      %v459 = vsel %vm453, %v458, %v457
      %vm460 = vcmp.lt.s32.totalorder %v452, 0
      %v461 = vsub.s32 0, %v452
      %v462 = vsel %vm460, %v461, %v452
      %v463 = vshrl.u32 %v462, 4
      %v464 = vand.u32 %v462, 15
      %v465 = vsub.s32 0, %v464
      %v466 = vsel %vm460, %v465, %v464
      %vm467 = vcmp.ne.s32.totalorder %v459, 0
      %vm468 = vcmp.ne.s32.totalorder %v466, 0
      %vm469 = vcmp.lt.s32.totalorder %v459, 0
      %vm470 = vcmp.lt.s32.totalorder %v466, 0
      %vm471 = vmand %vm469, %vm467
      %vm472 = vmand %vm470, %vm468
      %v473 = vadd.s32 %v459, 16
      %v474 = vadd.s32 %v466, 16
      %v475 = vsel %vm471, %v473, %v459
      %v476 = vsel %vm472, %v474, %v466
      %vm477 = vcmp.gt.s32.totalorder %v475, 0
      %vm478 = vcmp.gt.s32.totalorder %v476, 0
      %v479 = vsel %vm477, 1.0, 0.0
      %v480 = vsel %vm478, 1.0, 0.0
      %v481 = vpack.c.bf16 %v479, %v479
      %v482 = vpack.c.bf16 %v480, %v480
      %vm483 = vcmp.lt.s32.totalorder %v475, 15
      %vm484 = vcmp.lt.s32.totalorder %v476, 15
      %v485 = vsel %vm483, 1.0, 0.0
      %v486 = vsel %vm484, 1.0, 0.0
      %v487 = vpack.c.bf16 %v485, %v485
      %v488 = vpack.c.bf16 %v486, %v486
      %491 = vrot.lane.b32.xlu0 %v446, 17
      %v492 = vpop.permute.xlu0 %491
      %493 = vrot.lane.b32.xlu0 %v447, 17
      %v494 = vpop.permute.xlu0 %493
      %vm495 = vcmask 138240
      %v496 = vsel %vm495, %v492, %v494
      %vm498 = vcmask 138240
      %v501 = vsel %vm498, 0, %v492
      %v504 = vsel %vm498, %v494, 0
      %v506 = vmul.bf16 %v501, %v481
      %v507 = vmul.bf16 %v496, %v482
      %510 = vrot.lane.b32.xlu0 %v487, 2
      %v511 = vpop.permute.xlu0 %510
      %512 = vrot.lane.b32.xlu0 %v488, 2
      %v513 = vpop.permute.xlu0 %512
      %vm514 = vcmask 15360
      %v515 = vsel %vm514, %v511, %v513
      %v519 = vmul.bf16 %v501, %v511
      %v520 = vmul.bf16 %v496, %v515
      %v521 = vmul.bf16 %v504, %v513
      %524 = vrot.lane.b32.xlu0 %v481, 16
      %v525 = vpop.permute.xlu0 %524
      %526 = vrot.lane.b32.xlu0 %v482, 16
      %v527 = vpop.permute.xlu0 %526
      %vm528 = vcmask 130048
      %v529 = vsel %vm528, %v525, %v527
      %v533 = vmul.bf16 %v501, %v525
      %v534 = vmul.bf16 %v496, %v529
      %v535 = vmul.bf16 %v504, %v527
      %536 = vrot.lane.b32.xlu0 %v487, 18
      %v537 = vpop.permute.xlu0 %536
      %538 = vrot.lane.b32.xlu0 %v488, 18
      %v539 = vpop.permute.xlu0 %538
      %vm540 = vcmask 146432
      %v541 = vsel %vm540, %v537, %v539
      %v545 = vmul.bf16 %v501, %v537
      %v546 = vmul.bf16 %v496, %v541
      %v547 = vmul.bf16 %v504, %v539
      %548 = vrot.lane.b32.xlu0 %v481, 32
      %v549 = vpop.permute.xlu0 %548
      %550 = vrot.lane.b32.xlu0 %v482, 32
      %v551 = vpop.permute.xlu0 %550
      %vm552 = vcmask 261120
      %v553 = vsel %vm552, %v549, %v551
      %v557 = vmul.bf16 %v501, %v549
      %v558 = vmul.bf16 %v496, %v553
      %v559 = vmul.bf16 %v504, %v551
      %560 = vrot.lane.b32.xlu0 %v487, 34
      %v561 = vpop.permute.xlu0 %560
      %562 = vrot.lane.b32.xlu0 %v488, 34
      %v563 = vpop.permute.xlu0 %562
      %vm564 = vcmask 277504
      %v565 = vsel %vm564, %v561, %v563
      %v569 = vmul.bf16 %v501, %v561
      %v570 = vmul.bf16 %v496, %v565
      %v571 = vmul.bf16 %v504, %v563
      %v574 = vrot.slane %v501, 6
      %v575 = vrot.slane %v496, 6
      %v576 = vrot.slane %v504, 6
      %577 = vrot.lane.b32.xlu0 %v574, 127
      %v578 = vpop.permute.xlu0 %577
      %579 = vrot.lane.b32.xlu0 %v575, 127
      %v580 = vpop.permute.xlu0 %579
      %581 = vrot.lane.b32.xlu0 %v576, 127
      %v582 = vpop.permute.xlu0 %581
      %vm583 = vcmask 1039360
      %v584 = vsel %vm583, %v578, %v580
      %v585 = vsel %vm583, %v580, %v582
      %v589 = vrot.slane %v519, 4
      %v590 = vrot.slane %v520, 4
      %v591 = vrot.slane %v521, 4
      %592 = vrot.lane.b32.xlu0 %v589, 126
      %v593 = vpop.permute.xlu0 %592
      %594 = vrot.lane.b32.xlu0 %v590, 126
      %v595 = vpop.permute.xlu0 %594
      %596 = vrot.lane.b32.xlu0 %v591, 126
      %v597 = vpop.permute.xlu0 %596
      %vm598 = vcmask 1031168
      %v599 = vsel %vm598, %v593, %v595
      %v600 = vsel %vm598, %v595, %v597
      %v604 = vrot.slane %v533, 2
      %v605 = vrot.slane %v534, 2
      %v606 = vrot.slane %v535, 2
      %607 = vrot.lane.b32.xlu0 %v604, 112
      %v608 = vpop.permute.xlu0 %607
      %609 = vrot.lane.b32.xlu0 %v605, 112
      %v610 = vpop.permute.xlu0 %609
      %611 = vrot.lane.b32.xlu0 %v606, 112
      %v612 = vpop.permute.xlu0 %611
      %vm613 = vcmask 916480
      %v614 = vsel %vm613, %v608, %v610
      %v615 = vsel %vm613, %v610, %v612
      %616 = vrot.lane.b32.xlu0 %v501, 111
      %v617 = vpop.permute.xlu0 %616
      %618 = vrot.lane.b32.xlu0 %v496, 111
      %v619 = vpop.permute.xlu0 %618
      %620 = vrot.lane.b32.xlu0 %v504, 111
      %v621 = vpop.permute.xlu0 %620
      %vm622 = vcmask 908288
      %v623 = vsel %vm622, %v617, %v619
      %v624 = vsel %vm622, %v619, %v621
      %v628 = vrot.slane %v545, 6
      %v629 = vrot.slane %v546, 6
      %v630 = vrot.slane %v547, 6
      %631 = vrot.lane.b32.xlu0 %v628, 110
      %v632 = vpop.permute.xlu0 %631
      %633 = vrot.lane.b32.xlu0 %v629, 110
      %v634 = vpop.permute.xlu0 %633
      %635 = vrot.lane.b32.xlu0 %v630, 110
      %v636 = vpop.permute.xlu0 %635
      %vm637 = vcmask 900096
      %v638 = vsel %vm637, %v632, %v634
      %v639 = vsel %vm637, %v634, %v636
      %v643 = vrot.slane %v557, 4
      %v644 = vrot.slane %v558, 4
      %v645 = vrot.slane %v559, 4
      %646 = vrot.lane.b32.xlu0 %v643, 96
      %v647 = vpop.permute.xlu0 %646
      %648 = vrot.lane.b32.xlu0 %v644, 96
      %v649 = vpop.permute.xlu0 %648
      %650 = vrot.lane.b32.xlu0 %v645, 96
      %v651 = vpop.permute.xlu0 %650
      %vm652 = vcmask 785408
      %v653 = vsel %vm652, %v647, %v649
      %v654 = vsel %vm652, %v649, %v651
      %v655 = vrot.slane %v501, 2
      %v656 = vrot.slane %v496, 2
      %v657 = vrot.slane %v504, 2
      %658 = vrot.lane.b32.xlu0 %v655, 95
      %v659 = vpop.permute.xlu0 %658
      %660 = vrot.lane.b32.xlu0 %v656, 95
      %v661 = vpop.permute.xlu0 %660
      %662 = vrot.lane.b32.xlu0 %v657, 95
      %v663 = vpop.permute.xlu0 %662
      %vm664 = vcmask 777216
      %v665 = vsel %vm664, %v659, %v661
      %v666 = vsel %vm664, %v661, %v663
      %670 = vrot.lane.b32.xlu0 %v569, 94
      %v671 = vpop.permute.xlu0 %670
      %672 = vrot.lane.b32.xlu0 %v570, 94
      %v673 = vpop.permute.xlu0 %672
      %674 = vrot.lane.b32.xlu0 %v571, 94
      %v675 = vpop.permute.xlu0 %674
      %vm676 = vcmask 769024
      %v677 = vsel %vm676, %v671, %v673
      %v678 = vsel %vm676, %v673, %v675
      %vm679 = vcmask 1041408
      %v682 = vsel %vm679, %v506, %v584
      %v685 = vsel %vm679, %v507, %v585
      %vm686 = vcmask 1043456
      %v688 = vsel %vm686, %v682, %v599
      %v690 = vsel %vm686, %v685, %v600
      %vm691 = vcmask 1045504
      %v693 = vsel %vm691, %v688, %v614
      %v696 = vsel %vm691, %v690, %v615
      %v700 = vsel %vm679, %v623, %v638
      %v703 = vsel %vm679, %v624, %v639
      %v705 = vsel %vm686, %v700, %v653
      %v707 = vsel %vm686, %v703, %v654
      %v709 = vsel %vm691, %v705, %v665
      %v712 = vsel %vm691, %v707, %v666
      %715 = vset.pattern.permute.xlu0 0
      %716 = vperm.xlu0 %715, %v449
      %v717 = vpop.permute.xlu0 %716
      %vm719 = vcmask 293888
      %v721 = vsel %vm719, %v448, 0
      %v724 = vsel %vm679, %v677, 0
      %v727 = vsel %vm679, %v678, 0
      %729 = vmatprep.subr.bf16.mxu0 0
      %730 = vmatpush1.bf16.msra.mxu0 0
      %731 = vmatprep.subr.bf16.mxu0 0
      %732 = vmatpush1.bf16.msra.mxu0 0
      %733 = vmatprep.subr.bf16.mxu0 0
      %734 = vmatpush1.bf16.msra.mxu0 0
      %735 = vmatprep.subr.bf16.mxu0 0
      %736 = vmatpush1.bf16.msra.mxu0 0
      %737 = vmatprep.subr.bf16.mxu0 0
      %738 = vmatpush1.bf16.msra.mxu0 0
      %739 = vmatprep.subr.bf16.mxu0 %v727
      %740 = vmatpush1.bf16.msra.mxu0 %v724
      %741 = vmatprep.subr.bf16.mxu0 %v712
      %742 = vmatpush1.bf16.msra.mxu0 %v709
      %743 = vmatprep.subr.bf16.mxu0 %v696
      %744 = vmatpush1.bf16.msra.mxu0 %v693
      %745 = vmatprep.subr.bf16.mxu0 0
      %746 = vmatpush2.bf16.msra.mxu0 0
      %747 = vmatprep.subr.bf16.mxu0 0
      %748 = vmatpush2.bf16.msra.mxu0 0
      %749 = vmatprep.subr.bf16.mxu0 0
      %750 = vmatpush2.bf16.msra.mxu0 0
      %751 = vmatprep.subr.bf16.mxu0 0
      %752 = vmatpush2.bf16.msra.mxu0 0
      %753 = vmatprep.subr.bf16.mxu0 0
      %754 = vmatpush2.bf16.msra.mxu0 0
      %755 = vmatprep.subr.bf16.mxu0 0
      %756 = vmatpush2.bf16.msra.mxu0 0
      %757 = vmatprep.subr.bf16.mxu0 0
      %758 = vmatpush2.bf16.msra.mxu0 0
      %759 = vmatprep.subr.bf16.mxu0 0
      %760 = vmatpush2.bf16.msra.mxu0 0
      %761 = vmatprep.mubr.bf16.mxu0 0
      %762 = vmatmul.mubr.bf16.gmra.mxu0 %v721
      %v763 = vpop.f32.mrf.mxu0
      %v764 = vadd.f32 %v717, %v763
      %v765 = vpop.f32.mrf.mxu0
      %v766 = vadd.f32 %v717, %v765
      %v767 = vpop.f32.mrf.mxu0
      %v768 = vpop.f32.mrf.mxu0
      %769 = vdwg.mxu0
      %v770 = vmax.f32 %v764, 0.0
      %v771 = vmax.f32 %v766, 0.0
      %v772 = vpack.c.bf16 %v770, %v770
      %v773 = vpack.c.bf16 %v771, %v771
      %v774 = vld [vmem:[%s9] sm:$0xf]
      %v775 = vld [vmem:[%s9 + $0x4] sm:$0xf]
      %v776 = vld [vmem:[%s9 + $0x8] sm:$0xf]
      %v777 = vld [vmem:[%s9 + $0xc] sm:$0xf]
      %v778 = vld [vmem:[%s9 + $0x10] sm:$0xf]
      %v779 = vld [vmem:[%s9 + $0x14] sm:$0xf]
      %v780 = vld [vmem:[%s9 + $0x18] sm:$0xf]
      %v781 = vld [vmem:[%s9 + $0x1c] sm:$0xf]
      %v782 = vld [vmem:[%s9 + $0x20] sm:$0xf]
      %v783 = vld [vmem:[%s9 + $0x24] sm:$0xf]
      %v784 = vld [vmem:[%s9 + $0x28] sm:$0xf]
      %v785 = vld [vmem:[%s9 + $0x2c] sm:$0xf]
      %v786 = vld [vmem:[%s9 + $0x30] sm:$0xf]
      %v787 = vld [vmem:[%s9 + $0x34] sm:$0xf]
      %v788 = vld [vmem:[%s9 + $0x38] sm:$0xf]
      %v789 = vld [vmem:[%s9 + $0x3c] sm:$0xf]
      %v790 = vld [vmem:[%s9 + $0x40] sm:$0xf]
      %v791 = vld [vmem:[%s9 + $0x44] sm:$0xf]
      %v792 = vld [vmem:[%s9 + $0x48] sm:$0xf]
      %v793 = vld [vmem:[%s9 + $0x4c] sm:$0xf]
      %v794 = vld [vmem:[%s9 + $0x50] sm:$0xf]
      %v795 = vld [vmem:[%s9 + $0x54] sm:$0xf]
      %v796 = vld [vmem:[%s9 + $0x58] sm:$0xf]
      %v797 = vld [vmem:[%s9 + $0x5c] sm:$0xf]
      %v798 = vld [vmem:[%s9 + $0x60] sm:$0xf]
      %v799 = vld [vmem:[%s9 + $0x64] sm:$0xf]
      %v800 = vld [vmem:[%s9 + $0x68] sm:$0xf]
      %v801 = vld [vmem:[%s9 + $0x6c] sm:$0xf]
      %v802 = vld [vmem:[%s9 + $0x70] sm:$0xf]
      %v803 = vld [vmem:[%s9 + $0x74] sm:$0xf]
      %v804 = vld [vmem:[%s9 + $0x78] sm:$0xf]
      %v805 = vld [vmem:[%s9 + $0x7c] sm:$0xf]
      %808 = vrot.lane.b32.xlu0 %v772, 127
      %v809 = vpop.permute.xlu0 %808
      %810 = vrot.lane.b32.xlu0 %v773, 127
      %v811 = vpop.permute.xlu0 %810
      %v812 = vsel %vm583, %v809, %v811
      %vm814 = vcmask 1039360
      %v816 = vsel %vm814, %v811, 0
      %v818 = vmax.bf16 %v772, %v812
      %v819 = vmax.bf16 %v773, %v816
      %822 = vrot.lane.b32.xlu0 %v818, 112
      %v823 = vpop.permute.xlu0 %822
      %824 = vrot.lane.b32.xlu0 %v819, 112
      %v825 = vpop.permute.xlu0 %824
      %v826 = vsel %vm613, %v823, %v825
      %vm828 = vcmask 916480
      %v830 = vsel %vm828, %v825, 0
      %v832 = vmax.bf16 %v818, %v826
      %v833 = vmax.bf16 %v819, %v830
      %v866 = vunpack.c.l.b16 %v774
      %v867 = vunpack.c.l.b16 %v775
      %v868 = vunpack.c.l.b16 %v776
      %v869 = vunpack.c.l.b16 %v777
      %v870 = vunpack.c.l.b16 %v778
      %v871 = vunpack.c.l.b16 %v779
      %v872 = vunpack.c.l.b16 %v780
      %v873 = vunpack.c.l.b16 %v781
      %v874 = vunpack.c.l.b16 %v782
      %v875 = vunpack.c.l.b16 %v783
      %v876 = vunpack.c.l.b16 %v784
      %v877 = vunpack.c.l.b16 %v785
      %v878 = vunpack.c.l.b16 %v786
      %v879 = vunpack.c.l.b16 %v787
      %v880 = vunpack.c.l.b16 %v788
      %v881 = vunpack.c.l.b16 %v789
      %v882 = vunpack.c.l.b16 %v790
      %v883 = vunpack.c.l.b16 %v791
      %v884 = vunpack.c.l.b16 %v792
      %v885 = vunpack.c.l.b16 %v793
      %v886 = vunpack.c.l.b16 %v794
      %v887 = vunpack.c.l.b16 %v795
      %v888 = vunpack.c.l.b16 %v796
      %v889 = vunpack.c.l.b16 %v797
      %v890 = vunpack.c.l.b16 %v798
      %v891 = vunpack.c.l.b16 %v799
      %v892 = vunpack.c.l.b16 %v800
      %v893 = vunpack.c.l.b16 %v801
      %v894 = vunpack.c.l.b16 %v802
      %v895 = vunpack.c.l.b16 %v803
      %v896 = vunpack.c.l.b16 %v804
      %v897 = vunpack.c.l.b16 %v805
      %v898 = vpack.c.b16 %v867, %v866
      %v899 = vpack.c.b16 %v869, %v868
      %v900 = vpack.c.b16 %v871, %v870
      %v901 = vpack.c.b16 %v873, %v872
      %v902 = vpack.c.b16 %v875, %v874
      %v903 = vpack.c.b16 %v877, %v876
      %v904 = vpack.c.b16 %v879, %v878
      %v905 = vpack.c.b16 %v881, %v880
      %v906 = vpack.c.b16 %v883, %v882
      %v907 = vpack.c.b16 %v885, %v884
      %v908 = vpack.c.b16 %v887, %v886
      %v909 = vpack.c.b16 %v889, %v888
      %v910 = vpack.c.b16 %v891, %v890
      %v911 = vpack.c.b16 %v893, %v892
      %v912 = vpack.c.b16 %v895, %v894
      %v913 = vpack.c.b16 %v897, %v896
      %930 = vmatprep.subr.bf16.mxu0 0
      %931 = vmatpush1.bf16.msra.mxu0 %v905
      %932 = vmatprep.subr.bf16.mxu0 0
      %933 = vmatpush1.bf16.msra.mxu0 %v904
      %934 = vmatprep.subr.bf16.mxu0 0
      %935 = vmatpush1.bf16.msra.mxu0 %v903
      %936 = vmatprep.subr.bf16.mxu0 0
      %937 = vmatpush1.bf16.msra.mxu0 %v902
      %938 = vmatprep.subr.bf16.mxu0 0
      %939 = vmatpush1.bf16.msra.mxu0 %v901
      %940 = vmatprep.subr.bf16.mxu0 0
      %941 = vmatpush1.bf16.msra.mxu0 %v900
      %942 = vmatprep.subr.bf16.mxu0 0
      %943 = vmatpush1.bf16.msra.mxu0 %v899
      %944 = vmatprep.subr.bf16.mxu0 0
      %945 = vmatpush1.bf16.msra.mxu0 %v898
      %946 = vmatprep.subr.bf16.mxu0 0
      %947 = vmatpush2.bf16.msra.mxu0 %v913
      %948 = vmatprep.subr.bf16.mxu0 0
      %949 = vmatpush2.bf16.msra.mxu0 %v912
      %950 = vmatprep.subr.bf16.mxu0 0
      %951 = vmatpush2.bf16.msra.mxu0 %v911
      %952 = vmatprep.subr.bf16.mxu0 0
      %953 = vmatpush2.bf16.msra.mxu0 %v910
      %954 = vmatprep.subr.bf16.mxu0 0
      %955 = vmatpush2.bf16.msra.mxu0 %v909
      %956 = vmatprep.subr.bf16.mxu0 0
      %957 = vmatpush2.bf16.msra.mxu0 %v908
      %958 = vmatprep.subr.bf16.mxu0 0
      %959 = vmatpush2.bf16.msra.mxu0 %v907
      %960 = vmatprep.subr.bf16.mxu0 0
      %961 = vmatpush2.bf16.msra.mxu0 %v906
      %962 = vmatprep.mubr.bf16.mxu0 %v833
      %963 = vmatmul.mubr.bf16.gmra.mxu0 %v832
      %v964 = vpop.f32.mrf.mxu0
      %v965 = vadd.f32 0.0, %v964
      %v966 = vpop.f32.mrf.mxu0
      %v967 = vpop.f32.mrf.mxu0
      %v968 = vpop.f32.mrf.mxu0
      %969 = vdwg.mxu0
      %v970 = vpack.c.bf16 %v965, %v965
      %v971 = vld [vmem:[%s3] sm:$0xf]
      %v972 = vld [vmem:[%s3 + $0x4] sm:$0xf]
      %v973 = vld [vmem:[%s4] sm:$0xff]
      %v974 = vld [vmem:[%s4 + $0x8] sm:$0xff]
      %vm975 = vcmp.lt.s32.totalorder %v451, 0
      %v976 = vsub.s32 0, %v451
      %v977 = vsel %vm975, %v976, %v451
      %v978 = vshrl.u32 %v977, 3
      %v979 = vand.u32 %v977, 7
      %v980 = vsub.s32 0, %v979
      %v981 = vsel %vm975, %v980, %v979
      %vm982 = vcmp.ne.s32.totalorder %v981, 0
      %vm983 = vcmp.lt.s32.totalorder %v981, 0
      %vm984 = vmand %vm983, %vm982
      %v985 = vadd.s32 %v981, 8
      %v986 = vsel %vm984, %v985, %v981
      %vm987 = vcmp.gt.s32.totalorder %v986, 0
      %v988 = vsel %vm987, 1.0, 0.0
      %v989 = vpack.c.bf16 %v988, %v988
      %vm990 = vcmp.lt.s32.totalorder %v986, 7
      %v991 = vsel %vm990, 1.0, 0.0
      %v992 = vpack.c.bf16 %v991, %v991
      %994 = vrot.lane.b32.xlu0 %v970, 9
      %v995 = vpop.permute.xlu0 %994
      %vm996 = vcmask 72704
      %v998 = vsel %vm996, 0, %v995
      %vm999 = vcmask 596992
      %v1000 = vsel %vm999, %v998, 0
      %v1002 = vmul.bf16 %v1000, %v989
      %1004 = vrot.lane.b32.xlu0 %v992, 2
      %v1005 = vpop.permute.xlu0 %1004
      %v1007 = vmul.bf16 %v1000, %v1005
      %1009 = vrot.lane.b32.xlu0 %v989, 8
      %v1010 = vpop.permute.xlu0 %1009
      %v1012 = vmul.bf16 %v1000, %v1010
      %1013 = vrot.lane.b32.xlu0 %v992, 10
      %v1014 = vpop.permute.xlu0 %1013
      %v1016 = vmul.bf16 %v1000, %v1014
      %1017 = vrot.lane.b32.xlu0 %v989, 16
      %v1018 = vpop.permute.xlu0 %1017
      %v1020 = vmul.bf16 %v1000, %v1018
      %1021 = vrot.lane.b32.xlu0 %v992, 18
      %v1022 = vpop.permute.xlu0 %1021
      %v1024 = vmul.bf16 %v1000, %v1022
      %v1026 = vrot.slane %v1000, 4
      %1027 = vrot.lane.b32.xlu0 %v1026, 127
      %v1028 = vpop.permute.xlu0 %1027
      %1030 = vrot.lane.b32.xlu0 %v1007, 126
      %v1031 = vpop.permute.xlu0 %1030
      %v1033 = vrot.slane %v1012, 4
      %1034 = vrot.lane.b32.xlu0 %v1033, 120
      %v1035 = vpop.permute.xlu0 %1034
      %1036 = vrot.lane.b32.xlu0 %v1000, 119
      %v1037 = vpop.permute.xlu0 %1036
      %v1039 = vrot.slane %v1016, 4
      %1040 = vrot.lane.b32.xlu0 %v1039, 118
      %v1041 = vpop.permute.xlu0 %1040
      %1043 = vrot.lane.b32.xlu0 %v1020, 112
      %v1044 = vpop.permute.xlu0 %1043
      %1045 = vrot.lane.b32.xlu0 %v1026, 111
      %v1046 = vpop.permute.xlu0 %1045
      %1048 = vrot.lane.b32.xlu0 %v1024, 110
      %v1049 = vpop.permute.xlu0 %1048
      %v1052 = vsel %vm686, %v1002, %v1028
      %v1056 = vsel %vm686, %v1031, %v1035
      %v1060 = vsel %vm686, %v1037, %v1041
      %v1064 = vsel %vm686, %v1044, %v1046
      %1067 = vset.pattern.permute.xlu0 0
      %1068 = vperm.xlu0 %1067, %v973
      %v1069 = vpop.permute.xlu0 %1068
      %1072 = vset.pattern.permute.xlu0 0
      %1073 = vperm.xlu0 %1072, %v974
      %v1074 = vpop.permute.xlu0 %1073
      %v1078 = vunpack.c.l.b16 %v971
      %v1079 = vunpack.c.l.b16 %v972
      %v1080 = vpack.c.b16 %v1079, %v1078
      %vm1081 = vcmask 588800
      %v1083 = vsel %vm1081, %v1080, 0
      %v1086 = vsel %vm686, %v1049, 0
      %1088 = vmatprep.subr.bf16.mxu0 0
      %1089 = vmatpush1.bf16.msra.mxu0 0
      %1090 = vmatprep.subr.bf16.mxu0 0
      %1091 = vmatpush1.bf16.msra.mxu0 0
      %1092 = vmatprep.subr.bf16.mxu0 0
      %1093 = vmatpush1.bf16.msra.mxu0 0
      %1094 = vmatprep.subr.bf16.mxu0 0
      %1095 = vmatpush1.bf16.msra.mxu0 %v1086
      %1096 = vmatprep.subr.bf16.mxu0 0
      %1097 = vmatpush1.bf16.msra.mxu0 %v1064
      %1098 = vmatprep.subr.bf16.mxu0 0
      %1099 = vmatpush1.bf16.msra.mxu0 %v1060
      %1100 = vmatprep.subr.bf16.mxu0 0
      %1101 = vmatpush1.bf16.msra.mxu0 %v1056
      %1102 = vmatprep.subr.bf16.mxu0 0
      %1103 = vmatpush1.bf16.msra.mxu0 %v1052
      %1104 = vmatprep.subr.bf16.mxu0 0
      %1105 = vmatpush2.bf16.msra.mxu0 0
      %1106 = vmatprep.subr.bf16.mxu0 0
      %1107 = vmatpush2.bf16.msra.mxu0 0
      %1108 = vmatprep.subr.bf16.mxu0 0
      %1109 = vmatpush2.bf16.msra.mxu0 0
      %1110 = vmatprep.subr.bf16.mxu0 0
      %1111 = vmatpush2.bf16.msra.mxu0 0
      %1112 = vmatprep.subr.bf16.mxu0 0
      %1113 = vmatpush2.bf16.msra.mxu0 0
      %1114 = vmatprep.subr.bf16.mxu0 0
      %1115 = vmatpush2.bf16.msra.mxu0 0
      %1116 = vmatprep.subr.bf16.mxu0 0
      %1117 = vmatpush2.bf16.msra.mxu0 0
      %1118 = vmatprep.subr.bf16.mxu0 0
      %1119 = vmatpush2.bf16.msra.mxu0 0
      %1120 = vmatprep.mubr.bf16.mxu0 0
      %1121 = vmatmul.mubr.bf16.gmra.mxu0 %v1083
      %v1122 = vpop.f32.mrf.mxu0
      %v1123 = vadd.f32 %v1069, %v1122
      %v1124 = vpop.f32.mrf.mxu0
      %v1125 = vpop.f32.mrf.mxu0
      %v1126 = vadd.f32 %v1074, %v1125
      %v1127 = vpop.f32.mrf.mxu0
      %1128 = vdwg.mxu0
      %v1129 = vmax.f32 %v1123, 0.0
      %v1130 = vmax.f32 %v1126, 0.0
      %v1131 = vpack.c.bf16 %v1130, %v1129
      %v1132 = vld [vmem:[%s10] sm:$0xf]
      %v1133 = vld [vmem:[%s10 + $0x4] sm:$0xf]
      %v1134 = vld [vmem:[%s10 + $0x8] sm:$0xf]
      %v1135 = vld [vmem:[%s10 + $0xc] sm:$0xf]
      %v1136 = vld [vmem:[%s10 + $0x10] sm:$0xf]
      %v1137 = vld [vmem:[%s10 + $0x14] sm:$0xf]
      %v1138 = vld [vmem:[%s10 + $0x18] sm:$0xf]
      %v1139 = vld [vmem:[%s10 + $0x1c] sm:$0xf]
      %1141 = vrot.lane.b32.xlu0 %v1131, 127
      %v1142 = vpop.permute.xlu0 %1141
      %vm1143 = vcmask 515072
      %v1145 = vsel %vm1143, %v1142, 0
      %v1147 = vmax.bf16 %v1131, %v1145
      %1149 = vrot.lane.b32.xlu0 %v1147, 120
      %v1150 = vpop.permute.xlu0 %1149
      %vm1151 = vcmask 457728
      %v1153 = vsel %vm1151, %v1150, 0
      %v1155 = vmax.bf16 %v1147, %v1153
      %v1164 = vunpack.c.l.b16 %v1132
      %v1165 = vunpack.c.l.b16 %v1133
      %v1166 = vunpack.c.l.b16 %v1134
      %v1167 = vunpack.c.l.b16 %v1135
      %v1168 = vunpack.c.l.b16 %v1136
      %v1169 = vunpack.c.l.b16 %v1137
      %v1170 = vunpack.c.l.b16 %v1138
      %v1171 = vunpack.c.l.b16 %v1139
      %v1172 = vpack.c.b16 %v1165, %v1164
      %v1173 = vpack.c.b16 %v1167, %v1166
      %v1174 = vpack.c.b16 %v1169, %v1168
      %v1175 = vpack.c.b16 %v1171, %v1170
      %vm1180 = vcmask 523264
      %v1182 = vsel %vm1180, %v1155, 0
      %1184 = vmatprep.subr.bf16.mxu0 0
      %1185 = vmatpush1.bf16.msra.mxu0 0
      %1186 = vmatprep.subr.bf16.mxu0 0
      %1187 = vmatpush1.bf16.msra.mxu0 0
      %1188 = vmatprep.subr.bf16.mxu0 0
      %1189 = vmatpush1.bf16.msra.mxu0 0
      %1190 = vmatprep.subr.bf16.mxu0 0
      %1191 = vmatpush1.bf16.msra.mxu0 0
      %1192 = vmatprep.subr.bf16.mxu0 0
      %1193 = vmatpush1.bf16.msra.mxu0 %v1175
      %1194 = vmatprep.subr.bf16.mxu0 0
      %1195 = vmatpush1.bf16.msra.mxu0 %v1174
      %1196 = vmatprep.subr.bf16.mxu0 0
      %1197 = vmatpush1.bf16.msra.mxu0 %v1173
      %1198 = vmatprep.subr.bf16.mxu0 0
      %1199 = vmatpush1.bf16.msra.mxu0 %v1172
      %1200 = vmatprep.subr.bf16.mxu0 0
      %1201 = vmatpush2.bf16.msra.mxu0 0
      %1202 = vmatprep.subr.bf16.mxu0 0
      %1203 = vmatpush2.bf16.msra.mxu0 0
      %1204 = vmatprep.subr.bf16.mxu0 0
      %1205 = vmatpush2.bf16.msra.mxu0 0
      %1206 = vmatprep.subr.bf16.mxu0 0
      %1207 = vmatpush2.bf16.msra.mxu0 0
      %1208 = vmatprep.subr.bf16.mxu0 0
      %1209 = vmatpush2.bf16.msra.mxu0 0
      %1210 = vmatprep.subr.bf16.mxu0 0
      %1211 = vmatpush2.bf16.msra.mxu0 0
      %1212 = vmatprep.subr.bf16.mxu0 0
      %1213 = vmatpush2.bf16.msra.mxu0 0
      %1214 = vmatprep.subr.bf16.mxu0 0
      %1215 = vmatpush2.bf16.msra.mxu0 0
      %1216 = vmatprep.mubr.bf16.mxu0 0
      %1217 = vmatmul.mubr.bf16.gmra.mxu0 %v1182
      %v1218 = vpop.f32.mrf.mxu0
      %v1219 = vadd.f32 0.0, %v1218
      %v1220 = vpop.f32.mrf.mxu0
      %v1221 = vpop.f32.mrf.mxu0
      %v1222 = vadd.f32 0.0, %v1221
      %v1223 = vpop.f32.mrf.mxu0
      %1224 = vdwg.mxu0
      %v1225 = vpack.c.bf16 %v1222, %v1219
      %v1226 = vld [vmem:[%s11] sm:$0xf]
      %v1227 = vld [vmem:[%s11 + $0x4] sm:$0xf]
      %v1230 = vunpack.c.l.b16 %v1226
      %v1231 = vunpack.c.l.b16 %v1227
      %v1232 = vpack.c.b16 %v1231, %v1230
      %vm1234 = vcmask 130048
      %v1236 = vsel %vm1234, %v1225, 0
      %1238 = vmatprep.subr.bf16.mxu0 0
      %1239 = vmatpush1.bf16.msra.mxu0 0
      %1240 = vmatprep.subr.bf16.mxu0 0
      %1241 = vmatpush1.bf16.msra.mxu0 0
      %1242 = vmatprep.subr.bf16.mxu0 0
      %1243 = vmatpush1.bf16.msra.mxu0 0
      %1244 = vmatprep.subr.bf16.mxu0 0
      %1245 = vmatpush1.bf16.msra.mxu0 0
      %1246 = vmatprep.subr.bf16.mxu0 0
      %1247 = vmatpush1.bf16.msra.mxu0 0
      %1248 = vmatprep.subr.bf16.mxu0 0
      %1249 = vmatpush1.bf16.msra.mxu0 0
      %1250 = vmatprep.subr.bf16.mxu0 0
      %1251 = vmatpush1.bf16.msra.mxu0 0
      %1252 = vmatprep.subr.bf16.mxu0 0
      %1253 = vmatpush1.bf16.msra.mxu0 %v1232
      %1254 = vmatprep.subr.bf16.mxu0 0
      %1255 = vmatpush2.bf16.msra.mxu0 0
      %1256 = vmatprep.subr.bf16.mxu0 0
      %1257 = vmatpush2.bf16.msra.mxu0 0
      %1258 = vmatprep.subr.bf16.mxu0 0
      %1259 = vmatpush2.bf16.msra.mxu0 0
      %1260 = vmatprep.subr.bf16.mxu0 0
      %1261 = vmatpush2.bf16.msra.mxu0 0
      %1262 = vmatprep.subr.bf16.mxu0 0
      %1263 = vmatpush2.bf16.msra.mxu0 0
      %1264 = vmatprep.subr.bf16.mxu0 0
      %1265 = vmatpush2.bf16.msra.mxu0 0
      %1266 = vmatprep.subr.bf16.mxu0 0
      %1267 = vmatpush2.bf16.msra.mxu0 0
      %1268 = vmatprep.subr.bf16.mxu0 0
      %1269 = vmatpush2.bf16.msra.mxu0 0
      %1270 = vmatprep.mubr.bf16.mxu0 0
      %1271 = vmatmul.mubr.bf16.gmra.mxu0 %v1236
      %v1272 = vpop.f32.mrf.mxu0
      %v1273 = vadd.f32 0.0, %v1272
      %v1274 = vpop.f32.mrf.mxu0
      %v1275 = vpop.f32.mrf.mxu0
      %v1276 = vadd.f32 0.0, %v1275
      %v1277 = vpop.f32.mrf.mxu0
      %1278 = vdwg.mxu0
      %v1279 = vpack.c.bf16 %v1276, %v1273
      %v1280 = vld [vmem:[%s5] sm:$0xff]
      %v1281 = vld [vmem:[%s5 + $0x8] sm:$0xf]
      %v1282 = vld [vmem:[%s5 + $0xc] sm:$0xff]
      %v1283 = vld [vmem:[%s5 + $0x14] sm:$0xf]
      %v1284 = vld [vmem:[%s6] sm:$0xff]
      %v1285 = vld [vmem:[%s6 + $0x8] sm:$0xff]
      %1287 = vrot.lane.b32.xlu0 %v1279, 9
      %v1288 = vpop.permute.xlu0 %1287
      %v1290 = vsel %vm996, 0, %v1288
      %v1291 = vsel %vm999, %v1290, 0
      %v1293 = vmul.bf16 %v1291, %v989
      %v1294 = vmul.bf16 %v1291, %v1005
      %v1295 = vmul.bf16 %v1291, %v1010
      %v1296 = vmul.bf16 %v1291, %v1014
      %v1297 = vmul.bf16 %v1291, %v1018
      %v1298 = vmul.bf16 %v1291, %v1022
      %1300 = vrot.lane.b32.xlu0 %v1291, 127
      %v1301 = vpop.permute.xlu0 %1300
      %1304 = vrot.lane.b32.xlu0 %v1294, 126
      %v1305 = vpop.permute.xlu0 %1304
      %1308 = vrot.lane.b32.xlu0 %v1295, 120
      %v1309 = vpop.permute.xlu0 %1308
      %1311 = vrot.lane.b32.xlu0 %v1291, 119
      %v1312 = vpop.permute.xlu0 %1311
      %1315 = vrot.lane.b32.xlu0 %v1296, 118
      %v1316 = vpop.permute.xlu0 %1315
      %1319 = vrot.lane.b32.xlu0 %v1297, 112
      %v1320 = vpop.permute.xlu0 %1319
      %1322 = vrot.lane.b32.xlu0 %v1291, 111
      %v1323 = vpop.permute.xlu0 %1322
      %1326 = vrot.lane.b32.xlu0 %v1298, 110
      %v1327 = vpop.permute.xlu0 %1326
      %1329 = vrot.lane.b32.xlu0 %v1298, 127
      %v1330 = vpop.permute.xlu0 %1329
      %1331 = vrot.lane.b32.xlu0 %v1330, 111
      %v1332 = vpop.permute.xlu0 %1331
      %1335 = vset.pattern.permute.xlu0 0
      %1336 = vperm.xlu0 %1335, %v1284
      %v1337 = vpop.permute.xlu0 %1336
      %1340 = vset.pattern.permute.xlu0 0
      %1341 = vperm.xlu0 %1340, %v1285
      %v1342 = vpop.permute.xlu0 %1341
      %v1348 = vunpack.c.l.b16 %v1280
      %v1349 = vunpack.c.h.b16 %v1280
      %v1350 = vunpack.c.l.b16 %v1281
      %v1351 = vunpack.c.l.b16 %v1282
      %v1352 = vunpack.c.h.b16 %v1282
      %v1353 = vunpack.c.l.b16 %v1283
      %v1354 = vpack.c.b16 %v1351, %v1348
      %v1355 = vpack.c.b16 %v1352, %v1349
      %v1356 = vpack.c.b16 %v1353, %v1350
      %vm1359 = vcmask 261120
      %v1361 = vsel %vm1359, %v1356, 0
      %1363 = vmatprep.subr.bf16.mxu0 0
      %1364 = vmatpush1.bf16.msra.mxu0 %v1323
      %1365 = vmatprep.subr.bf16.mxu0 0
      %1366 = vmatpush1.bf16.msra.mxu0 %v1320
      %1367 = vmatprep.subr.bf16.mxu0 0
      %1368 = vmatpush1.bf16.msra.mxu0 %v1316
      %1369 = vmatprep.subr.bf16.mxu0 0
      %1370 = vmatpush1.bf16.msra.mxu0 %v1312
      %1371 = vmatprep.subr.bf16.mxu0 0
      %1372 = vmatpush1.bf16.msra.mxu0 %v1309
      %1373 = vmatprep.subr.bf16.mxu0 0
      %1374 = vmatpush1.bf16.msra.mxu0 %v1305
      %1375 = vmatprep.subr.bf16.mxu0 0
      %1376 = vmatpush1.bf16.msra.mxu0 %v1301
      %1377 = vmatprep.subr.bf16.mxu0 0
      %1378 = vmatpush1.bf16.msra.mxu0 %v1293
      %1379 = vmatprep.subr.bf16.mxu0 0
      %1380 = vmatpush2.bf16.msra.mxu0 %v1320
      %1381 = vmatprep.subr.bf16.mxu0 0
      %1382 = vmatpush2.bf16.msra.mxu0 %v1316
      %1383 = vmatprep.subr.bf16.mxu0 0
      %1384 = vmatpush2.bf16.msra.mxu0 %v1312
      %1385 = vmatprep.subr.bf16.mxu0 0
      %1386 = vmatpush2.bf16.msra.mxu0 %v1309
      %1387 = vmatprep.subr.bf16.mxu0 0
      %1388 = vmatpush2.bf16.msra.mxu0 %v1305
      %1389 = vmatprep.subr.bf16.mxu0 0
      %1390 = vmatpush2.bf16.msra.mxu0 %v1301
      %1391 = vmatprep.subr.bf16.mxu0 0
      %1392 = vmatpush2.bf16.msra.mxu0 %v1293
      %1393 = vmatprep.subr.bf16.mxu0 0
      %1394 = vmatpush2.bf16.msra.mxu0 %v1327
      %1395 = vmatprep.mubr.bf16.mxu0 %v1355
      %1396 = vmatmul.mubr.bf16.gmra.mxu0 %v1354
      %v1397 = vpop.f32.mrf.mxu0
      %v1398 = vadd.f32 %v1337, %v1397
      %v1399 = vpop.f32.mrf.mxu0
      %v1400 = vpop.f32.mrf.mxu0
      %v1401 = vadd.f32 %v1342, %v1400
      %v1402 = vpop.f32.mrf.mxu0
      %1403 = vdwg.mxu0
      %1404 = vmatprep.subr.bf16.mxu0 0
      %1405 = vmatpush1.bf16.msra.mxu0 0
      %1406 = vmatprep.subr.bf16.mxu0 0
      %1407 = vmatpush1.bf16.msra.mxu0 0
      %1408 = vmatprep.subr.bf16.mxu0 0
      %1409 = vmatpush1.bf16.msra.mxu0 0
      %1410 = vmatprep.subr.bf16.mxu0 0
      %1411 = vmatpush1.bf16.msra.mxu0 0
      %1412 = vmatprep.subr.bf16.mxu0 0
      %1413 = vmatpush1.bf16.msra.mxu0 0
      %1414 = vmatprep.subr.bf16.mxu0 0
      %1415 = vmatpush1.bf16.msra.mxu0 0
      %1416 = vmatprep.subr.bf16.mxu0 0
      %1417 = vmatpush1.bf16.msra.mxu0 %v1332
      %1418 = vmatprep.subr.bf16.mxu0 0
      %1419 = vmatpush1.bf16.msra.mxu0 %v1323
      %1420 = vmatprep.subr.bf16.mxu0 0
      %1421 = vmatpush2.bf16.msra.mxu0 0
      %1422 = vmatprep.subr.bf16.mxu0 0
      %1423 = vmatpush2.bf16.msra.mxu0 0
      %1424 = vmatprep.subr.bf16.mxu0 0
      %1425 = vmatpush2.bf16.msra.mxu0 0
      %1426 = vmatprep.subr.bf16.mxu0 0
      %1427 = vmatpush2.bf16.msra.mxu0 0
      %1428 = vmatprep.subr.bf16.mxu0 0
      %1429 = vmatpush2.bf16.msra.mxu0 0
      %1430 = vmatprep.subr.bf16.mxu0 0
      %1431 = vmatpush2.bf16.msra.mxu0 0
      %1432 = vmatprep.subr.bf16.mxu0 0
      %1433 = vmatpush2.bf16.msra.mxu0 0
      %1434 = vmatprep.subr.bf16.mxu0 0
      %1435 = vmatpush2.bf16.msra.mxu0 0
      %1436 = vmatprep.mubr.bf16.mxu0 0
      %1437 = vmatmul.mubr.bf16.gmra.mxu0 %v1361
      %v1438 = vpop.f32.mrf.mxu0
      %v1439 = vadd.f32 %v1398, %v1438
      %v1440 = vpop.f32.mrf.mxu0
      %v1441 = vpop.f32.mrf.mxu0
      %v1442 = vadd.f32 %v1401, %v1441
      %v1443 = vpop.f32.mrf.mxu0
      %1444 = vdwg.mxu0
      %v1445 = vmax.f32 %v1439, 0.0
      %v1446 = vmax.f32 %v1442, 0.0
      %v1447 = vpack.c.bf16 %v1446, %v1445
      %v1448 = vld [vmem:[%s12] sm:$0xff]
      %v1449 = vld [vmem:[%s12 + $0x8] sm:$0xff]
      %v1450 = vld [vmem:[%s12 + $0x10] sm:$0xff]
      %v1451 = vld [vmem:[%s12 + $0x18] sm:$0xff]
      %v1452 = vld [vmem:[%s12 + $0x20] sm:$0xff]
      %v1453 = vld [vmem:[%s12 + $0x28] sm:$0xff]
      %v1454 = vld [vmem:[%s12 + $0x30] sm:$0xff]
      %v1455 = vld [vmem:[%s12 + $0x38] sm:$0xff]
      %v1464 = vunpack.c.l.b16 %v1448
      %v1465 = vunpack.c.h.b16 %v1448
      %v1466 = vunpack.c.l.b16 %v1449
      %v1467 = vunpack.c.h.b16 %v1449
      %v1468 = vunpack.c.l.b16 %v1450
      %v1469 = vunpack.c.h.b16 %v1450
      %v1470 = vunpack.c.l.b16 %v1451
      %v1471 = vunpack.c.h.b16 %v1451
      %v1472 = vunpack.c.l.b16 %v1452
      %v1473 = vunpack.c.h.b16 %v1452
      %v1474 = vunpack.c.l.b16 %v1453
      %v1475 = vunpack.c.h.b16 %v1453
      %v1476 = vunpack.c.l.b16 %v1454
      %v1477 = vunpack.c.h.b16 %v1454
      %v1478 = vunpack.c.l.b16 %v1455
      %v1479 = vunpack.c.h.b16 %v1455
      %v1480 = vpack.c.b16 %v1466, %v1464
      %v1481 = vpack.c.b16 %v1467, %v1465
      %v1482 = vpack.c.b16 %v1470, %v1468
      %v1483 = vpack.c.b16 %v1471, %v1469
      %v1484 = vpack.c.b16 %v1474, %v1472
      %v1485 = vpack.c.b16 %v1475, %v1473
      %v1486 = vpack.c.b16 %v1478, %v1476
      %v1487 = vpack.c.b16 %v1479, %v1477
      %v1497 = vsel %vm1180, %v970, 0
      %1499 = vmatprep.subr.bf16.mxu0 0
      %1500 = vmatpush1.bf16.msra.mxu0 0
      %1501 = vmatprep.subr.bf16.mxu0 0
      %1502 = vmatpush1.bf16.msra.mxu0 0
      %1503 = vmatprep.subr.bf16.mxu0 0
      %1504 = vmatpush1.bf16.msra.mxu0 0
      %1505 = vmatprep.subr.bf16.mxu0 0
      %1506 = vmatpush1.bf16.msra.mxu0 0
      %1507 = vmatprep.subr.bf16.mxu0 %v1487
      %1508 = vmatpush1.bf16.msra.mxu0 %v1486
      %1509 = vmatprep.subr.bf16.mxu0 %v1485
      %1510 = vmatpush1.bf16.msra.mxu0 %v1484
      %1511 = vmatprep.subr.bf16.mxu0 %v1483
      %1512 = vmatpush1.bf16.msra.mxu0 %v1482
      %1513 = vmatprep.subr.bf16.mxu0 %v1481
      %1514 = vmatpush1.bf16.msra.mxu0 %v1480
      %1515 = vmatprep.subr.bf16.mxu0 0
      %1516 = vmatpush2.bf16.msra.mxu0 0
      %1517 = vmatprep.subr.bf16.mxu0 0
      %1518 = vmatpush2.bf16.msra.mxu0 0
      %1519 = vmatprep.subr.bf16.mxu0 0
      %1520 = vmatpush2.bf16.msra.mxu0 0
      %1521 = vmatprep.subr.bf16.mxu0 0
      %1522 = vmatpush2.bf16.msra.mxu0 0
      %1523 = vmatprep.subr.bf16.mxu0 0
      %1524 = vmatpush2.bf16.msra.mxu0 0
      %1525 = vmatprep.subr.bf16.mxu0 0
      %1526 = vmatpush2.bf16.msra.mxu0 0
      %1527 = vmatprep.subr.bf16.mxu0 0
      %1528 = vmatpush2.bf16.msra.mxu0 0
      %1529 = vmatprep.subr.bf16.mxu0 0
      %1530 = vmatpush2.bf16.msra.mxu0 0
      %1531 = vmatprep.mubr.bf16.mxu0 0
      %1532 = vmatmul.mubr.bf16.gmra.mxu0 %v1497
      %v1533 = vpop.f32.mrf.mxu0
      %v1534 = vadd.f32 0.0, %v1533
      %v1535 = vpop.f32.mrf.mxu0
      %v1536 = vadd.f32 0.0, %v1535
      %v1537 = vpop.f32.mrf.mxu0
      %v1538 = vpop.f32.mrf.mxu0
      %1539 = vdwg.mxu0
      %v1540 = vpack.c.bf16 %v1534, %v1534
      %v1541 = vpack.c.bf16 %v1536, %v1536
      %v1543 = vsel %vm1180, %v1447, 0
      %1545 = vmatprep.subr.bf16.mxu0 0
      %1546 = vmatpush1.bf16.msra.mxu0 0
      %1547 = vmatprep.subr.bf16.mxu0 0
      %1548 = vmatpush1.bf16.msra.mxu0 0
      %1549 = vmatprep.subr.bf16.mxu0 0
      %1550 = vmatpush1.bf16.msra.mxu0 0
      %1551 = vmatprep.subr.bf16.mxu0 0
      %1552 = vmatpush1.bf16.msra.mxu0 0
      %1553 = vmatprep.subr.bf16.mxu0 %v1487
      %1554 = vmatpush1.bf16.msra.mxu0 %v1486
      %1555 = vmatprep.subr.bf16.mxu0 %v1485
      %1556 = vmatpush1.bf16.msra.mxu0 %v1484
      %1557 = vmatprep.subr.bf16.mxu0 %v1483
      %1558 = vmatpush1.bf16.msra.mxu0 %v1482
      %1559 = vmatprep.subr.bf16.mxu0 %v1481
      %1560 = vmatpush1.bf16.msra.mxu0 %v1480
      %1561 = vmatprep.subr.bf16.mxu0 0
      %1562 = vmatpush2.bf16.msra.mxu0 0
      %1563 = vmatprep.subr.bf16.mxu0 0
      %1564 = vmatpush2.bf16.msra.mxu0 0
      %1565 = vmatprep.subr.bf16.mxu0 0
      %1566 = vmatpush2.bf16.msra.mxu0 0
      %1567 = vmatprep.subr.bf16.mxu0 0
      %1568 = vmatpush2.bf16.msra.mxu0 0
      %1569 = vmatprep.subr.bf16.mxu0 0
      %1570 = vmatpush2.bf16.msra.mxu0 0
      %1571 = vmatprep.subr.bf16.mxu0 0
      %1572 = vmatpush2.bf16.msra.mxu0 0
      %1573 = vmatprep.subr.bf16.mxu0 0
      %1574 = vmatpush2.bf16.msra.mxu0 0
      %1575 = vmatprep.subr.bf16.mxu0 0
      %1576 = vmatpush2.bf16.msra.mxu0 0
      %1577 = vmatprep.mubr.bf16.mxu0 0
      %1578 = vmatmul.mubr.bf16.gmra.mxu0 %v1543
      %v1579 = vpop.f32.mrf.mxu0
      %v1580 = vadd.f32 0.0, %v1579
      %v1581 = vpop.f32.mrf.mxu0
      %v1582 = vadd.f32 0.0, %v1581
      %v1583 = vpop.f32.mrf.mxu0
      %v1584 = vadd.f32 0.0, %v1583
      %v1585 = vpop.f32.mrf.mxu0
      %v1586 = vadd.f32 0.0, %v1585
      %1587 = vdwg.mxu0
      %v1588 = vpack.c.bf16 %v1584, %v1580
      %v1589 = vpack.c.bf16 %v1586, %v1582
      %v1590 = vld [vmem:[%s7] sm:$0xff]
      %v1591 = vld [vmem:[%s8] sm:$0xff]
      %1594 = vrot.lane.b32.xlu0 %v1540, 17
      %v1595 = vpop.permute.xlu0 %1594
      %1596 = vrot.lane.b32.xlu0 %v1541, 17
      %v1597 = vpop.permute.xlu0 %1596
      %v1598 = vsel %vm495, %v1595, %v1597
      %v1601 = vsel %vm498, 0, %v1595
      %v1604 = vsel %vm498, %v1597, 0
      %v1606 = vmul.bf16 %v1601, %v481
      %v1607 = vmul.bf16 %v1598, %v482
      %v1608 = vmul.bf16 %v1601, %v511
      %v1609 = vmul.bf16 %v1598, %v515
      %v1610 = vmul.bf16 %v1604, %v513
      %v1611 = vmul.bf16 %v1601, %v525
      %v1612 = vmul.bf16 %v1598, %v529
      %v1613 = vmul.bf16 %v1604, %v527
      %v1614 = vmul.bf16 %v1601, %v537
      %v1615 = vmul.bf16 %v1598, %v541
      %v1616 = vmul.bf16 %v1604, %v539
      %v1617 = vmul.bf16 %v1601, %v549
      %v1618 = vmul.bf16 %v1598, %v553
      %v1619 = vmul.bf16 %v1604, %v551
      %v1620 = vmul.bf16 %v1601, %v561
      %v1621 = vmul.bf16 %v1598, %v565
      %v1622 = vmul.bf16 %v1604, %v563
      %1625 = vrot.lane.b32.xlu0 %v1588, 17
      %v1626 = vpop.permute.xlu0 %1625
      %1627 = vrot.lane.b32.xlu0 %v1589, 17
      %v1628 = vpop.permute.xlu0 %1627
      %v1629 = vsel %vm495, %v1626, %v1628
      %v1632 = vsel %vm498, 0, %v1626
      %v1635 = vsel %vm498, %v1628, 0
      %v1637 = vmul.bf16 %v1632, %v481
      %v1638 = vmul.bf16 %v1629, %v482
      %v1639 = vmul.bf16 %v1632, %v511
      %v1640 = vmul.bf16 %v1629, %v515
      %v1641 = vmul.bf16 %v1635, %v513
      %v1642 = vmul.bf16 %v1632, %v525
      %v1643 = vmul.bf16 %v1629, %v529
      %v1644 = vmul.bf16 %v1635, %v527
      %v1645 = vmul.bf16 %v1632, %v537
      %v1646 = vmul.bf16 %v1629, %v541
      %v1647 = vmul.bf16 %v1635, %v539
      %v1648 = vmul.bf16 %v1632, %v549
      %v1649 = vmul.bf16 %v1629, %v553
      %v1650 = vmul.bf16 %v1635, %v551
      %v1651 = vmul.bf16 %v1632, %v561
      %v1652 = vmul.bf16 %v1629, %v565
      %v1653 = vmul.bf16 %v1635, %v563
      %v1656 = vrot.slane %v1601, 4
      %v1657 = vrot.slane %v1598, 4
      %v1658 = vrot.slane %v1604, 4
      %1659 = vrot.lane.b32.xlu0 %v1656, 127
      %v1660 = vpop.permute.xlu0 %1659
      %1661 = vrot.lane.b32.xlu0 %v1657, 127
      %v1662 = vpop.permute.xlu0 %1661
      %1663 = vrot.lane.b32.xlu0 %v1658, 127
      %v1664 = vpop.permute.xlu0 %1663
      %v1665 = vsel %vm583, %v1660, %v1662
      %v1666 = vsel %vm583, %v1662, %v1664
      %1670 = vrot.lane.b32.xlu0 %v1608, 126
      %v1671 = vpop.permute.xlu0 %1670
      %1672 = vrot.lane.b32.xlu0 %v1609, 126
      %v1673 = vpop.permute.xlu0 %1672
      %1674 = vrot.lane.b32.xlu0 %v1610, 126
      %v1675 = vpop.permute.xlu0 %1674
      %v1676 = vsel %vm598, %v1671, %v1673
      %v1677 = vsel %vm598, %v1673, %v1675
      %v1681 = vrot.slane %v1611, 4
      %v1682 = vrot.slane %v1612, 4
      %v1683 = vrot.slane %v1613, 4
      %1684 = vrot.lane.b32.xlu0 %v1681, 112
      %v1685 = vpop.permute.xlu0 %1684
      %1686 = vrot.lane.b32.xlu0 %v1682, 112
      %v1687 = vpop.permute.xlu0 %1686
      %1688 = vrot.lane.b32.xlu0 %v1683, 112
      %v1689 = vpop.permute.xlu0 %1688
      %v1690 = vsel %vm613, %v1685, %v1687
      %v1691 = vsel %vm613, %v1687, %v1689
      %1692 = vrot.lane.b32.xlu0 %v1601, 111
      %v1693 = vpop.permute.xlu0 %1692
      %1694 = vrot.lane.b32.xlu0 %v1598, 111
      %v1695 = vpop.permute.xlu0 %1694
      %1696 = vrot.lane.b32.xlu0 %v1604, 111
      %v1697 = vpop.permute.xlu0 %1696
      %v1698 = vsel %vm622, %v1693, %v1695
      %v1699 = vsel %vm622, %v1695, %v1697
      %v1703 = vrot.slane %v1614, 4
      %v1704 = vrot.slane %v1615, 4
      %v1705 = vrot.slane %v1616, 4
      %1706 = vrot.lane.b32.xlu0 %v1703, 110
      %v1707 = vpop.permute.xlu0 %1706
      %1708 = vrot.lane.b32.xlu0 %v1704, 110
      %v1709 = vpop.permute.xlu0 %1708
      %1710 = vrot.lane.b32.xlu0 %v1705, 110
      %v1711 = vpop.permute.xlu0 %1710
      %v1712 = vsel %vm637, %v1707, %v1709
      %v1713 = vsel %vm637, %v1709, %v1711
      %1717 = vrot.lane.b32.xlu0 %v1617, 96
      %v1718 = vpop.permute.xlu0 %1717
      %1719 = vrot.lane.b32.xlu0 %v1618, 96
      %v1720 = vpop.permute.xlu0 %1719
      %1721 = vrot.lane.b32.xlu0 %v1619, 96
      %v1722 = vpop.permute.xlu0 %1721
      %v1723 = vsel %vm652, %v1718, %v1720
      %v1724 = vsel %vm652, %v1720, %v1722
      %1725 = vrot.lane.b32.xlu0 %v1656, 95
      %v1726 = vpop.permute.xlu0 %1725
      %1727 = vrot.lane.b32.xlu0 %v1657, 95
      %v1728 = vpop.permute.xlu0 %1727
      %1729 = vrot.lane.b32.xlu0 %v1658, 95
      %v1730 = vpop.permute.xlu0 %1729
      %v1731 = vsel %vm664, %v1726, %v1728
      %v1732 = vsel %vm664, %v1728, %v1730
      %1736 = vrot.lane.b32.xlu0 %v1620, 94
      %v1737 = vpop.permute.xlu0 %1736
      %1738 = vrot.lane.b32.xlu0 %v1621, 94
      %v1739 = vpop.permute.xlu0 %1738
      %1740 = vrot.lane.b32.xlu0 %v1622, 94
      %v1741 = vpop.permute.xlu0 %1740
      %v1742 = vsel %vm676, %v1737, %v1739
      %v1743 = vsel %vm676, %v1739, %v1741
      %v1746 = vrot.slane %v1637, 4
      %v1747 = vrot.slane %v1638, 4
      %v1750 = vrot.slane %v1632, 4
      %v1751 = vrot.slane %v1629, 4
      %v1752 = vrot.slane %v1635, 4
      %1753 = vrot.lane.b32.xlu0 %v1750, 127
      %v1754 = vpop.permute.xlu0 %1753
      %1755 = vrot.lane.b32.xlu0 %v1751, 127
      %v1756 = vpop.permute.xlu0 %1755
      %1757 = vrot.lane.b32.xlu0 %v1752, 127
      %v1758 = vpop.permute.xlu0 %1757
      %v1759 = vsel %vm583, %v1754, %v1756
      %v1760 = vsel %vm583, %v1756, %v1758
      %v1764 = vrot.slane %v1639, 4
      %v1765 = vrot.slane %v1640, 4
      %v1766 = vrot.slane %v1641, 4
      %1767 = vrot.lane.b32.xlu0 %v1764, 126
      %v1768 = vpop.permute.xlu0 %1767
      %1769 = vrot.lane.b32.xlu0 %v1765, 126
      %v1770 = vpop.permute.xlu0 %1769
      %1771 = vrot.lane.b32.xlu0 %v1766, 126
      %v1772 = vpop.permute.xlu0 %1771
      %v1773 = vsel %vm598, %v1768, %v1770
      %v1774 = vsel %vm598, %v1770, %v1772
      %v1778 = vrot.slane %v1642, 4
      %v1779 = vrot.slane %v1643, 4
      %v1780 = vrot.slane %v1644, 4
      %1781 = vrot.lane.b32.xlu0 %v1778, 112
      %v1782 = vpop.permute.xlu0 %1781
      %1783 = vrot.lane.b32.xlu0 %v1779, 112
      %v1784 = vpop.permute.xlu0 %1783
      %1785 = vrot.lane.b32.xlu0 %v1780, 112
      %v1786 = vpop.permute.xlu0 %1785
      %v1787 = vsel %vm613, %v1782, %v1784
      %v1788 = vsel %vm613, %v1784, %v1786
      %1789 = vrot.lane.b32.xlu0 %v1750, 111
      %v1790 = vpop.permute.xlu0 %1789
      %1791 = vrot.lane.b32.xlu0 %v1751, 111
      %v1792 = vpop.permute.xlu0 %1791
      %1793 = vrot.lane.b32.xlu0 %v1752, 111
      %v1794 = vpop.permute.xlu0 %1793
      %v1795 = vsel %vm622, %v1790, %v1792
      %v1796 = vsel %vm622, %v1792, %v1794
      %v1800 = vrot.slane %v1645, 4
      %v1801 = vrot.slane %v1646, 4
      %v1802 = vrot.slane %v1647, 4
      %1803 = vrot.lane.b32.xlu0 %v1800, 110
      %v1804 = vpop.permute.xlu0 %1803
      %1805 = vrot.lane.b32.xlu0 %v1801, 110
      %v1806 = vpop.permute.xlu0 %1805
      %1807 = vrot.lane.b32.xlu0 %v1802, 110
      %v1808 = vpop.permute.xlu0 %1807
      %v1809 = vsel %vm637, %v1804, %v1806
      %v1810 = vsel %vm637, %v1806, %v1808
      %v1814 = vrot.slane %v1648, 4
      %v1815 = vrot.slane %v1649, 4
      %v1816 = vrot.slane %v1650, 4
      %1817 = vrot.lane.b32.xlu0 %v1814, 96
      %v1818 = vpop.permute.xlu0 %1817
      %1819 = vrot.lane.b32.xlu0 %v1815, 96
      %v1820 = vpop.permute.xlu0 %1819
      %1821 = vrot.lane.b32.xlu0 %v1816, 96
      %v1822 = vpop.permute.xlu0 %1821
      %v1823 = vsel %vm652, %v1818, %v1820
      %v1824 = vsel %vm652, %v1820, %v1822
      %v1827 = vsel %vm686, %v1606, %v1665
      %v1831 = vsel %vm686, %v1607, %v1666
      %v1835 = vsel %vm686, %v1676, %v1690
      %v1839 = vsel %vm686, %v1677, %v1691
      %v1843 = vsel %vm686, %v1698, %v1712
      %v1847 = vsel %vm686, %v1699, %v1713
      %v1851 = vsel %vm686, %v1723, %v1731
      %v1855 = vsel %vm686, %v1724, %v1732
      %v1859 = vsel %vm686, %v1742, %v1746
      %v1863 = vsel %vm686, %v1743, %v1747
      %v1866 = vsel %vm686, %v1746, %v1759
      %v1869 = vsel %vm686, %v1747, %v1760
      %v1872 = vsel %vm686, %v1759, %v1773
      %v1875 = vsel %vm686, %v1760, %v1774
      %v1878 = vsel %vm686, %v1773, %v1787
      %v1881 = vsel %vm686, %v1774, %v1788
      %v1884 = vsel %vm686, %v1787, %v1795
      %v1887 = vsel %vm686, %v1788, %v1796
      %v1890 = vsel %vm686, %v1795, %v1809
      %v1893 = vsel %vm686, %v1796, %v1810
      %v1896 = vsel %vm686, %v1809, %v1823
      %v1899 = vsel %vm686, %v1810, %v1824
      %1904 = vrot.lane.b32.xlu0 %v1651, 127
      %v1905 = vpop.permute.xlu0 %1904
      %1906 = vrot.lane.b32.xlu0 %v1652, 127
      %v1907 = vpop.permute.xlu0 %1906
      %1908 = vrot.lane.b32.xlu0 %v1653, 127
      %v1909 = vpop.permute.xlu0 %1908
      %v1910 = vsel %vm583, %v1905, %v1907
      %v1911 = vsel %vm583, %v1907, %v1909
      %vm1912 = vcmask 1043456
      %v1913 = vrot.slane %v1910, 4
      %v1914 = vsel %vm1912, %v1750, %v1913
      %v1915 = vrot.slane %v1911, 4
      %v1916 = vsel %vm1912, %v1751, %v1915
      %v1917 = vrot.slane %v1909, 4
      %v1918 = vsel %vm1912, %v1752, %v1917
      %1919 = vrot.lane.b32.xlu0 %v1750, 95
      %v1920 = vpop.permute.xlu0 %1919
      %1921 = vrot.lane.b32.xlu0 %v1751, 95
      %v1922 = vpop.permute.xlu0 %1921
      %1923 = vrot.lane.b32.xlu0 %v1752, 95
      %v1924 = vpop.permute.xlu0 %1923
      %1925 = vrot.lane.b32.xlu0 %v1914, 95
      %v1926 = vpop.permute.xlu0 %1925
      %1927 = vrot.lane.b32.xlu0 %v1916, 95
      %v1928 = vpop.permute.xlu0 %1927
      %1929 = vrot.lane.b32.xlu0 %v1918, 95
      %v1930 = vpop.permute.xlu0 %1929
      %1931 = vrot.lane.b32.xlu0 %v1913, 95
      %v1932 = vpop.permute.xlu0 %1931
      %1933 = vrot.lane.b32.xlu0 %v1915, 95
      %v1934 = vpop.permute.xlu0 %1933
      %1935 = vrot.lane.b32.xlu0 %v1917, 95
      %v1936 = vpop.permute.xlu0 %1935
      %v1937 = vsel %vm664, %v1920, %v1922
      %v1938 = vsel %vm664, %v1922, %v1924
      %v1939 = vsel %vm664, %v1926, %v1928
      %v1940 = vsel %vm664, %v1928, %v1930
      %v1941 = vsel %vm664, %v1932, %v1934
      %v1942 = vsel %vm664, %v1934, %v1936
      %v1946 = vsel %vm686, %v1823, %v1937
      %v1949 = vsel %vm686, %v1824, %v1938
      %1952 = vset.pattern.permute.xlu0 0
      %1953 = vperm.xlu0 %1952, %v1591
      %v1954 = vpop.permute.xlu0 %1953
      %v1957 = vunpack.c.l.b16 %v1590
      %v1958 = vunpack.c.h.b16 %v1590
      %v1959 = vpack.c.b16 %v1957, %v1957
      %v1960 = vpack.c.b16 %v1958, %v1958
      %vm1962 = vcmask 719872
      %v1964 = vsel %vm1962, %v1960, 0
      %v1967 = vsel %vm686, %v1941, 0
      %v1970 = vsel %vm686, %v1942, 0
      %1972 = vmatprep.subr.bf16.mxu0 %v1881
      %1973 = vmatpush1.bf16.msra.mxu0 %v1878
      %1974 = vmatprep.subr.bf16.mxu0 %v1875
      %1975 = vmatpush1.bf16.msra.mxu0 %v1872
      %1976 = vmatprep.subr.bf16.mxu0 %v1869
      %1977 = vmatpush1.bf16.msra.mxu0 %v1866
      %1978 = vmatprep.subr.bf16.mxu0 %v1863
      %1979 = vmatpush1.bf16.msra.mxu0 %v1859
      %1980 = vmatprep.subr.bf16.mxu0 %v1855
      %1981 = vmatpush1.bf16.msra.mxu0 %v1851
      %1982 = vmatprep.subr.bf16.mxu0 %v1847
      %1983 = vmatpush1.bf16.msra.mxu0 %v1843
      %1984 = vmatprep.subr.bf16.mxu0 %v1839
      %1985 = vmatpush1.bf16.msra.mxu0 %v1835
      %1986 = vmatprep.subr.bf16.mxu0 %v1831
      %1987 = vmatpush1.bf16.msra.mxu0 %v1827
      %1988 = vmatprep.subr.bf16.mxu0 0
      %1989 = vmatpush2.bf16.msra.mxu0 0
      %1990 = vmatprep.subr.bf16.mxu0 0
      %1991 = vmatpush2.bf16.msra.mxu0 0
      %1992 = vmatprep.subr.bf16.mxu0 %v1970
      %1993 = vmatpush2.bf16.msra.mxu0 %v1967
      %1994 = vmatprep.subr.bf16.mxu0 %v1940
      %1995 = vmatpush2.bf16.msra.mxu0 %v1939
      %1996 = vmatprep.subr.bf16.mxu0 %v1949
      %1997 = vmatpush2.bf16.msra.mxu0 %v1946
      %1998 = vmatprep.subr.bf16.mxu0 %v1899
      %1999 = vmatpush2.bf16.msra.mxu0 %v1896
      %2000 = vmatprep.subr.bf16.mxu0 %v1893
      %2001 = vmatpush2.bf16.msra.mxu0 %v1890
      %2002 = vmatprep.subr.bf16.mxu0 %v1887
      %2003 = vmatpush2.bf16.msra.mxu0 %v1884
      %2004 = vmatprep.mubr.bf16.mxu0 %v1964
      %2005 = vmatmul.mubr.bf16.gmra.mxu0 %v1959
      %v2006 = vpop.f32.mrf.mxu0
      %v2007 = vadd.f32 %v1954, %v2006
      %v2008 = vpop.f32.mrf.mxu0
      %v2009 = vadd.f32 %v1954, %v2008
      %v2010 = vpop.f32.mrf.mxu0
      %v2011 = vpop.f32.mrf.mxu0
      %2012 = vdwg.mxu0
      %v2013 = vmax.f32 %v2007, 0.0
      %v2014 = vmax.f32 %v2009, 0.0
      %2015 = vst [vmem:[%s440] sm:$0xff] %v2013
      %2016 = vst [vmem:[%s440 + $0x8] sm:$0xff] %v2014
      %p2017 = scmp.lt.s32.totalorder %s24, 1
      %s2018 = scalar_select %p2017, %s24, 1
      %s2019 = smul.addr %s2018, 2
      %s2020 = smul.addr %s2019, 8
      %s2021 = scalar_lea.vmem %s13, %s2020
      // Predicated region
      $region73: #{unet_forward.1} parent=71 // pred_check
        %p2022 = pneg %p320
      $region74: #{unet_forward.1} parent=71 // pred_check_branch
        %2024 = sbr.rel (%p2022) target = $region76
      $region75: #{unet_forward.1} parent=71 // pred_region
        _
      $region76: #{unet_forward.1} parent=71 // pred_fallthru
        _
    $region72: #{unet_forward.1} parent=5 // pred_fallthru
      _
    %p2025 = scmp.le.s32.totalorder 2, %s19
    // Predicated region
    $region77: #{unet_forward.1} parent=5 // pred_check
      %p2026 = pneg %p2025
    $region78: #{unet_forward.1} parent=5 // pred_check_branch
      %2028 = sbr.rel (%p2026) target = $region80
    $region79: #{unet_forward.1} parent=5 // pred_region
      %s2029 = ssub.s32 %s19, 2
      // Predicated region
      $region81: #{unet_forward.1} parent=79 // pred_check
        %p2030 = pneg %p326
      $region82: #{unet_forward.1} parent=79 // pred_check_branch
        %2032 = sbr.rel (%p2030) target = $region84
      $region83: #{unet_forward.1} parent=79 // pred_region
        %p2033 = scmp.lt.s32.totalorder %s25, 1
        %s2034 = scalar_select %p2033, %s25, 1
        %s2035 = smul.addr %s2034, 2
        %s2036 = smul.addr %s2035, 8
        %s2037 = scalar_lea.vmem %s13, %s2036
      $region84: #{unet_forward.1} parent=79 // pred_fallthru
        _
    $region80: #{unet_forward.1} parent=5 // pred_fallthru
      _
  $region6: #{unet_forward.1} parent=0 // loop_footer
    %s23 = sadd.s32 1, %s19
  $region7: #{unet_forward.1} parent=0 // loop_footer_branch
    %18 = sbr.rel target = $region3
  $region8: #{unet_forward.1} parent=0 // loop_exit
    _

</llo_original>
